<compile_context>
chip_gen: v7x
topology: tpu7x:2x2x1
jax: 0.10.0
libtpu: 0.0.40
codegen_flags: <defaults>
</compile_context>

<pallas_src>
import functools

import jax
import jax.numpy as jnp
from jax.experimental import pallas as pl
from jax.experimental.pallas import tpu as pltpu

_LANE = 128
_SUBLANE_BF16 = 16                       # (16, 128) bf16 vreg tile
_BIG_LAYER_BYTES = 8 * 1024 * 1024       # bf16 weight bigger than this -> streamed kernel
_FUSE_BUDGET_BYTES = 14 * 1024 * 1024    # max bf16 weight bytes resident in one fused call
_STREAM_TILE_BYTES = 4 * 1024 * 1024     # target bf16 weight tile for the streamed kernel
_VMEM_LIMIT_BYTES = 32 * 1024 * 1024     # explicit scoped-VMEM (v5e default is only 16 MiB)


def _round_up(x, m):
    return ((x + m - 1) // m) * m


def _row_tile(M):
    """Row tile over the (padded) batch: whole batch when small, 128/256 when big."""
    if M <= 256:
        return M
    return 256 if M % 256 == 0 else 128


def _pick_n_tile(K, N, target_bytes=_STREAM_TILE_BYTES):
    """Largest multiple of 128 that divides N with a (K, tn) bf16 tile <= target."""
    max_cols = max(_LANE, (target_bytes // (2 * K)) // _LANE * _LANE)
    tn = _LANE
    c = _LANE
    lim = min(N, max_cols)
    while c <= lim:
        if N % c == 0:
            tn = c
        c += _LANE
    return tn


# ----------------------------------------------------------------------------
# Kernel 1: full-K streamed linear for big (weight-bandwidth-bound) layers.
#   grid = (M tiles, N tiles), both "parallel"; no reduction axis, no scratch.
# ----------------------------------------------------------------------------
def _streamed_linear_kernel(x_ref, w_ref, b_ref, o_ref, *, apply_relu):
    y = jnp.dot(x_ref[...], w_ref[...],
                preferred_element_type=jnp.float32) + b_ref[...]
    if apply_relu:
        y = jnp.maximum(y, 0.0)
    o_ref[...] = y.astype(o_ref.dtype)


def streamed_linear(x, w, b, *, relu, out_dtype, tn=None):
    """y = relu?(x @ w + b) with the (K, N) bf16 weight streamed in full-K tiles.

    x: (M, K) bf16, w: (K, N) bf16, b: (1, N) f32.
    M is a multiple of 8 (caller pads); K, N are multiples of 128 (caller pads).
    """
    M, K = x.shape
    Kw, N = w.shape
    assert K == Kw and b.shape == (1, N)

    tm = _row_tile(M)
    assert M % tm == 0, (M, tm)
    tn = _pick_n_tile(K, N) if tn is None else tn
    assert N % tn == 0, (N, tn)

    kernel = functools.partial(_streamed_linear_kernel, apply_relu=relu)
    return pl.pallas_call(
        kernel,
        out_shape=jax.ShapeDtypeStruct((M, N), out_dtype),
        grid=(M // tm, N // tn),
        in_specs=[
            pl.BlockSpec((tm, K), lambda m, n: (m, 0)),
            pl.BlockSpec((K, tn), lambda m, n: (0, n)),
            pl.BlockSpec((1, tn), lambda m, n: (0, n)),
        ],
        out_specs=pl.BlockSpec((tm, tn), lambda m, n: (m, n)),
        compiler_params=pltpu.CompilerParams(
            dimension_semantics=("parallel", "parallel"),
            vmem_limit_bytes=_VMEM_LIMIT_BYTES),
    )(x, w, b)


# ----------------------------------------------------------------------------
# Kernel 2: fused chain of small layers (all weights resident in VMEM, the
# activation never leaves the chip between layers).
# ----------------------------------------------------------------------------
def _fused_chain_kernel(*refs, num_layers, relu_flags):
    # refs = (x_ref, w0, b0, w1, b1, ..., w_{L-1}, b_{L-1}, o_ref)
    x_ref = refs[0]
    o_ref = refs[-1]
    h = x_ref[...]
    for i in range(num_layers):
        w = refs[1 + 2 * i][...]
        b = refs[2 + 2 * i][...]
        y = jnp.dot(h, w, preferred_element_type=jnp.float32) + b
        if relu_flags[i]:
            y = jnp.maximum(y, 0.0)
        if i < num_layers - 1:
            h = y.astype(jnp.bfloat16)
        else:
            o_ref[...] = y.astype(o_ref.dtype)


def fused_chain(x, weights, biases, relu_flags, *, out_dtype):
    """Chain of small Linear(+ReLU) layers in one pallas_call.

    x: (M, K0) bf16; weights[i]: (K_i, N_i) bf16; biases[i]: (1, N_i) f32.
    Total bf16 weight bytes must be <= _FUSE_BUDGET_BYTES (fits the explicit
    32 MiB scoped-VMEM limit even when BlockSpec double-buffers them).
    """
    M, K0 = x.shape
    num_layers = len(weights)
    N_last = weights[-1].shape[1]

    tm = _row_tile(M)
    assert M % tm == 0, (M, tm)

    in_specs = [pl.BlockSpec((tm, K0), lambda m: (m, 0))]
    args = [x]
    for w, b in zip(weights, biases):
        Kw, Nw = w.shape
        in_specs.append(pl.BlockSpec((Kw, Nw), lambda m: (0, 0)))
        in_specs.append(pl.BlockSpec((1, Nw), lambda m: (0, 0)))
        args.append(w)
        args.append(b)

    kernel = functools.partial(
        _fused_chain_kernel,
        num_layers=num_layers,
        relu_flags=tuple(bool(f) for f in relu_flags),
    )
    # TODO(synk): on v7x the second TensorCore idles when the grid is (1,);
    # an explicit size-2 core axis splitting the widest layer's N would
    # recover ~1-2 us there (irrelevant on single-TC v5e/v6e).
    return pl.pallas_call(
        kernel,
        out_shape=jax.ShapeDtypeStruct((M, N_last), out_dtype),
        grid=(M // tm,),
        in_specs=in_specs,
        out_specs=pl.BlockSpec((tm, N_last), lambda m: (m, 0)),
        compiler_params=pltpu.CompilerParams(
            dimension_semantics=("parallel",),
            vmem_limit_bytes=_VMEM_LIMIT_BYTES),
    )(*args)


# ----------------------------------------------------------------------------
# MultiOutputModel: parameters, planning, forward
# ----------------------------------------------------------------------------
def full_layer_dims(embedding_dimension):
    e = embedding_dimension
    # (in, out) of the 9 Linear layers of the nn.Sequential
    return [
        (e, e // 2),          # Linear + ReLU
        (e // 2, e // 4),     # Linear + ReLU
        (e // 4, e // 8),     # Linear + ReLU   (Dropout -> identity at eval)
        (e // 8, e // 16),    # Linear + ReLU   (Dropout -> identity at eval)
        (e // 16, e // 16),   # Linear + ReLU   (Dropout -> identity at eval)
        (e // 16, e // 8),    # Linear + ReLU
        (e // 8, e // 4),     # Linear + ReLU
        (e // 4, e // 2),     # Linear + ReLU
        (e // 2, e),          # Linear (no activation)
    ]


def init_params(key, embedding_dimension, dtype=jnp.float32):
    """Kaiming-uniform-style init mirroring PyTorch's nn.Linear default."""
    params = []
    for fan_in, fan_out in full_layer_dims(embedding_dimension):
        key, kw, kb = jax.random.split(key, 3)
        bound = 1.0 / (fan_in ** 0.5)
        # stored as (in, out) so the kernel computes x @ W
        w = jax.random.uniform(kw, (fan_in, fan_out), dtype, -bound, bound)
        b = jax.random.uniform(kb, (fan_out,), dtype, -bound, bound)
        params.append((w, b))
    return params


def prepare_params(params):
    """Zero-pad feature dims to multiples of 128; weights -> bf16, biases -> (1, N) f32."""
    # TODO(synk): int8 (v5e/v6e) / fp8 (v7x) weight variants would halve HBM
    # traffic on this bandwidth-bound workload; not implemented here.
    prepped = []
    for w, b in params:
        K, N = w.shape
        Kp, Np = _round_up(K, _LANE), _round_up(N, _LANE)
        w_p = jnp.zeros((Kp, Np), jnp.bfloat16).at[:K, :N].set(
            w.astype(jnp.bfloat16))
        b_p = jnp.zeros((1, Np), jnp.float32).at[0, :N].set(
            b.astype(jnp.float32))
        prepped.append((w_p, b_p))
    return prepped


def build_plan(prepped, *, big_layer_bytes=_BIG_LAYER_BYTES,
               fuse_budget_bytes=_FUSE_BUDGET_BYTES):
    """Group layers: big weights get the streamed kernel, consecutive small
    layers get fused into one pallas_call.  At e=4096 this yields exactly 3
    calls: stream(L1), fuse(L2..L8, 10.6 MiB resident), stream(L9)."""
    sizes = [2 * w.shape[0] * w.shape[1] for w, _ in prepped]  # bf16 bytes
    plan = []
    i, n = 0, len(prepped)
    while i < n:
        if sizes[i] > big_layer_bytes:
            plan.append(("streamed", [i]))
            i += 1
        else:
            j, total = i, 0
            while (j < n and sizes[j] <= big_layer_bytes
                   and total + sizes[j] <= fuse_budget_bytes):
                total += sizes[j]
                j += 1
            plan.append(("fused", list(range(i, j))))
            i = j
    return plan


def multi_output_model_forward(prepped, plan, x, out_features):
    """Forward pass.  Dropout(p=0.1) layers are identity (eval/inference)."""
    # TODO(synk): train-mode Dropout (pltpu.prng_random_bits mask) not implemented.
    M, K = x.shape
    num_layers = len(prepped)
    K0p = prepped[0][0].shape[0]

    # Pad batch: >=16 rows (bf16 sublane tile), multiple of 128 when big.
    Mp = _round_up(max(M, 1), _SUBLANE_BF16)
    if Mp > 256:
        Mp = _round_up(M, 128)
    h = jnp.zeros((Mp, K0p), jnp.bfloat16).at[:M, :K].set(
        x.astype(jnp.bfloat16))

    for kind, idxs in plan:
        is_last_group = (idxs[-1] == num_layers - 1)
        out_dtype = jnp.float32 if is_last_group else jnp.bfloat16
        if kind == "streamed":
            i = idxs[0]
            w, b = prepped[i]
            h = streamed_linear(h, w, b, relu=(i < num_layers - 1),
                                out_dtype=out_dtype)
        else:
            ws = [prepped[i][0] for i in idxs]
            bs = [prepped[i][1] for i in idxs]
            relu_flags = [i < num_layers - 1 for i in idxs]
            h = fused_chain(h, ws, bs, relu_flags, out_dtype=out_dtype)

    return h[:M, :out_features]


# ----------------------------------------------------------------------------
# Reference (plain JAX) — same bf16-input / f32-accumulate numerics
# ----------------------------------------------------------------------------
def reference_forward(params, x):
    n = len(params)
    h = x
    for i, (w, b) in enumerate(params):
        y = jnp.dot(h.astype(jnp.bfloat16), w.astype(jnp.bfloat16),
                    preferred_element_type=jnp.float32) + b
        if i < n - 1:
            y = jnp.maximum(y, 0.0)
        h = y
    return h


if __name__ == "__main__":
    # Small, shape-consistent configuration (module default is 4096).
    embedding_dimension = 256
    batch = 8

    key = jax.random.PRNGKey(0)
    key, kx = jax.random.split(key)
    params = init_params(key, embedding_dimension)
    x = jax.random.normal(kx, (batch, embedding_dimension), jnp.float32)

    prepped = prepare_params(params)
    y_ref = reference_forward(params, x)

    # 1) Default plan: at e=256 the whole network is a single fused call.
    plan = build_plan(prepped)
    fwd = jax.jit(lambda p, xi: multi_output_model_forward(
        p, plan, xi, embedding_dimension))
    y = fwd(prepped, x)
    jax.block_until_ready(y)
    assert y.shape == (batch, embedding_dimension)
    assert jnp.allclose(y, y_ref, atol=1e-2, rtol=1e-2), float(
        jnp.max(jnp.abs(y - y_ref)))

    # 2) Force every layer through the streamed full-K kernel (the path the
    #    big e=4096 end layers take) and check it matches the same reference.
    plan_streamed = build_plan(prepped, big_layer_bytes=0)
    fwd_s = jax.jit(lambda p, xi: multi_output_model_forward(
        p, plan_streamed, xi, embedding_dimension))
    y_s = fwd_s(prepped, x)
    jax.block_until_ready(y_s)
    assert jnp.allclose(y_s, y_ref, atol=1e-2, rtol=1e-2), float(
        jnp.max(jnp.abs(y_s - y_ref)))

    # 3) Exercise the streamed kernel with multiple N tiles explicitly.
    k1, k2, k3 = jax.random.split(key, 3)
    w2 = jax.random.uniform(k1, (256, 256), jnp.float32, -0.05, 0.05).astype(
        jnp.bfloat16)
    b2 = jax.random.uniform(k2, (1, 256), jnp.float32, -0.05, 0.05)
    x2 = jax.random.normal(k3, (16, 256), jnp.float32).astype(jnp.bfloat16)
    y2 = streamed_linear(x2, w2, b2, relu=True, out_dtype=jnp.float32, tn=128)
    jax.block_until_ready(y2)
    y2_ref = jnp.maximum(
        jnp.dot(x2, w2, preferred_element_type=jnp.float32) + b2, 0.0)
    assert jnp.allclose(y2, y2_ref, atol=1e-2, rtol=1e-2)

    print("KERNEL_OK")
</pallas_src>

<mosaic_0001>
module attributes {stable_mosaic.version = 11 : i64} {
  func.func @_fused_chain_kernel(%arg0: i32, %arg1: memref<16x256xbf16, #tpu.memory_space<vmem>>, %arg2: memref<256x128xbf16, #tpu.memory_space<vmem>>, %arg3: memref<1x128xf32, #tpu.memory_space<vmem>>, %arg4: memref<128x128xbf16, #tpu.memory_space<vmem>>, %arg5: memref<1x128xf32, #tpu.memory_space<vmem>>, %arg6: memref<128x128xbf16, #tpu.memory_space<vmem>>, %arg7: memref<1x128xf32, #tpu.memory_space<vmem>>, %arg8: memref<128x128xbf16, #tpu.memory_space<vmem>>, %arg9: memref<1x128xf32, #tpu.memory_space<vmem>>, %arg10: memref<128x128xbf16, #tpu.memory_space<vmem>>, %arg11: memref<1x128xf32, #tpu.memory_space<vmem>>, %arg12: memref<128x128xbf16, #tpu.memory_space<vmem>>, %arg13: memref<1x128xf32, #tpu.memory_space<vmem>>, %arg14: memref<128x128xbf16, #tpu.memory_space<vmem>>, %arg15: memref<1x128xf32, #tpu.memory_space<vmem>>, %arg16: memref<128x128xbf16, #tpu.memory_space<vmem>>, %arg17: memref<1x128xf32, #tpu.memory_space<vmem>>, %arg18: memref<128x256xbf16, #tpu.memory_space<vmem>>, %arg19: memref<1x256xf32, #tpu.memory_space<vmem>>, %arg20: memref<16x256xf32, #tpu.memory_space<vmem>>) attributes {dimension_semantics = [#tpu.dimension_semantics<parallel>], iteration_bounds = array<i64: 1>, scalar_prefetch = 0 : i64, scratch_operands = 0 : i64, tpu.core_type = #tpu.core_type<tc>, window_params = [{transform_indices = @transform_0, window_bounds = array<i64: 16, 256>}, {pipeline_mode = #tpu.pipeline_mode<synchronous>, transform_indices = @transform_1, window_bounds = array<i64: 256, 128>}, {pipeline_mode = #tpu.pipeline_mode<synchronous>, transform_indices = @transform_2, window_bounds = array<i64: 1, 128>}, {pipeline_mode = #tpu.pipeline_mode<synchronous>, transform_indices = @transform_3, window_bounds = array<i64: 128, 128>}, {pipeline_mode = #tpu.pipeline_mode<synchronous>, transform_indices = @transform_4, window_bounds = array<i64: 1, 128>}, {pipeline_mode = #tpu.pipeline_mode<synchronous>, transform_indices = @transform_5, window_bounds = array<i64: 128, 128>}, {pipeline_mode = #tpu.pipeline_mode<synchronous>, transform_indices = @transform_6, window_bounds = array<i64: 1, 128>}, {pipeline_mode = #tpu.pipeline_mode<synchronous>, transform_indices = @transform_7, window_bounds = array<i64: 128, 128>}, {pipeline_mode = #tpu.pipeline_mode<synchronous>, transform_indices = @transform_8, window_bounds = array<i64: 1, 128>}, {pipeline_mode = #tpu.pipeline_mode<synchronous>, transform_indices = @transform_9, window_bounds = array<i64: 128, 128>}, {pipeline_mode = #tpu.pipeline_mode<synchronous>, transform_indices = @transform_10, window_bounds = array<i64: 1, 128>}, {pipeline_mode = #tpu.pipeline_mode<synchronous>, transform_indices = @transform_11, window_bounds = array<i64: 128, 128>}, {pipeline_mode = #tpu.pipeline_mode<synchronous>, transform_indices = @transform_12, window_bounds = array<i64: 1, 128>}, {pipeline_mode = #tpu.pipeline_mode<synchronous>, transform_indices = @transform_13, window_bounds = array<i64: 128, 128>}, {pipeline_mode = #tpu.pipeline_mode<synchronous>, transform_indices = @transform_14, window_bounds = array<i64: 1, 128>}, {pipeline_mode = #tpu.pipeline_mode<synchronous>, transform_indices = @transform_15, window_bounds = array<i64: 128, 128>}, {pipeline_mode = #tpu.pipeline_mode<synchronous>, transform_indices = @transform_16, window_bounds = array<i64: 1, 128>}, {pipeline_mode = #tpu.pipeline_mode<synchronous>, transform_indices = @transform_17, window_bounds = array<i64: 128, 256>}, {pipeline_mode = #tpu.pipeline_mode<synchronous>, transform_indices = @transform_18, window_bounds = array<i64: 1, 256>}, {transform_indices = @transform_19, window_bounds = array<i64: 16, 256>}]} {
    %c0 = arith.constant 0 : index
    %c0_0 = arith.constant 0 : index
    %0 = vector.load %arg1[%c0, %c0_0] : memref<16x256xbf16, #tpu.memory_space<vmem>>, vector<16x256xbf16>
    %c0_1 = arith.constant 0 : index
    %c0_2 = arith.constant 0 : index
    %1 = vector.load %arg2[%c0_1, %c0_2] : memref<256x128xbf16, #tpu.memory_space<vmem>>, vector<256x128xbf16>
    %c0_3 = arith.constant 0 : index
    %c0_4 = arith.constant 0 : index
    %2 = vector.load %arg3[%c0_3, %c0_4] : memref<1x128xf32, #tpu.memory_space<vmem>>, vector<1x128xf32>
    %cst = arith.constant dense<0.000000e+00> : vector<16x128xf32>
    %3 = tpu.matmul %0, %1, %cst {dimension_numbers = #tpu.dot_dimension_numbers<[1], [0], [0], [1], [0, 0, 1, 1], [], []>} : vector<16x256xbf16>, vector<256x128xbf16>, vector<16x128xf32> -> vector<16x128xf32>
    %4 = vector.broadcast %2 : vector<1x128xf32> to vector<16x128xf32>
    %5 = arith.addf %3, %4 : vector<16x128xf32>
    %cst_5 = arith.constant 0.000000e+00 : f32
    %6 = vector.broadcast %cst_5 : f32 to vector<16x128xf32>
    %7 = arith.maximumf %5, %6 : vector<16x128xf32>
    %8 = arith.truncf %7 : vector<16x128xf32> to vector<16x128xbf16>
    %c0_6 = arith.constant 0 : index
    %c0_7 = arith.constant 0 : index
    %9 = vector.load %arg4[%c0_6, %c0_7] : memref<128x128xbf16, #tpu.memory_space<vmem>>, vector<128x128xbf16>
    %c0_8 = arith.constant 0 : index
    %c0_9 = arith.constant 0 : index
    %10 = vector.load %arg5[%c0_8, %c0_9] : memref<1x128xf32, #tpu.memory_space<vmem>>, vector<1x128xf32>
    %cst_10 = arith.constant dense<0.000000e+00> : vector<16x128xf32>
    %11 = tpu.matmul %8, %9, %cst_10 {dimension_numbers = #tpu.dot_dimension_numbers<[1], [0], [0], [1], [0, 0, 1, 1], [], []>} : vector<16x128xbf16>, vector<128x128xbf16>, vector<16x128xf32> -> vector<16x128xf32>
    %12 = vector.broadcast %10 : vector<1x128xf32> to vector<16x128xf32>
    %13 = arith.addf %11, %12 : vector<16x128xf32>
    %cst_11 = arith.constant 0.000000e+00 : f32
    %14 = vector.broadcast %cst_11 : f32 to vector<16x128xf32>
    %15 = arith.maximumf %13, %14 : vector<16x128xf32>
    %16 = arith.truncf %15 : vector<16x128xf32> to vector<16x128xbf16>
    %c0_12 = arith.constant 0 : index
    %c0_13 = arith.constant 0 : index
    %17 = vector.load %arg6[%c0_12, %c0_13] : memref<128x128xbf16, #tpu.memory_space<vmem>>, vector<128x128xbf16>
    %c0_14 = arith.constant 0 : index
    %c0_15 = arith.constant 0 : index
    %18 = vector.load %arg7[%c0_14, %c0_15] : memref<1x128xf32, #tpu.memory_space<vmem>>, vector<1x128xf32>
    %cst_16 = arith.constant dense<0.000000e+00> : vector<16x128xf32>
    %19 = tpu.matmul %16, %17, %cst_16 {dimension_numbers = #tpu.dot_dimension_numbers<[1], [0], [0], [1], [0, 0, 1, 1], [], []>} : vector<16x128xbf16>, vector<128x128xbf16>, vector<16x128xf32> -> vector<16x128xf32>
    %20 = vector.broadcast %18 : vector<1x128xf32> to vector<16x128xf32>
    %21 = arith.addf %19, %20 : vector<16x128xf32>
    %cst_17 = arith.constant 0.000000e+00 : f32
    %22 = vector.broadcast %cst_17 : f32 to vector<16x128xf32>
    %23 = arith.maximumf %21, %22 : vector<16x128xf32>
    %24 = arith.truncf %23 : vector<16x128xf32> to vector<16x128xbf16>
    %c0_18 = arith.constant 0 : index
    %c0_19 = arith.constant 0 : index
    %25 = vector.load %arg8[%c0_18, %c0_19] : memref<128x128xbf16, #tpu.memory_space<vmem>>, vector<128x128xbf16>
    %c0_20 = arith.constant 0 : index
    %c0_21 = arith.constant 0 : index
    %26 = vector.load %arg9[%c0_20, %c0_21] : memref<1x128xf32, #tpu.memory_space<vmem>>, vector<1x128xf32>
    %cst_22 = arith.constant dense<0.000000e+00> : vector<16x128xf32>
    %27 = tpu.matmul %24, %25, %cst_22 {dimension_numbers = #tpu.dot_dimension_numbers<[1], [0], [0], [1], [0, 0, 1, 1], [], []>} : vector<16x128xbf16>, vector<128x128xbf16>, vector<16x128xf32> -> vector<16x128xf32>
    %28 = vector.broadcast %26 : vector<1x128xf32> to vector<16x128xf32>
    %29 = arith.addf %27, %28 : vector<16x128xf32>
    %cst_23 = arith.constant 0.000000e+00 : f32
    %30 = vector.broadcast %cst_23 : f32 to vector<16x128xf32>
    %31 = arith.maximumf %29, %30 : vector<16x128xf32>
    %32 = arith.truncf %31 : vector<16x128xf32> to vector<16x128xbf16>
    %c0_24 = arith.constant 0 : index
    %c0_25 = arith.constant 0 : index
    %33 = vector.load %arg10[%c0_24, %c0_25] : memref<128x128xbf16, #tpu.memory_space<vmem>>, vector<128x128xbf16>
    %c0_26 = arith.constant 0 : index
    %c0_27 = arith.constant 0 : index
    %34 = vector.load %arg11[%c0_26, %c0_27] : memref<1x128xf32, #tpu.memory_space<vmem>>, vector<1x128xf32>
    %cst_28 = arith.constant dense<0.000000e+00> : vector<16x128xf32>
    %35 = tpu.matmul %32, %33, %cst_28 {dimension_numbers = #tpu.dot_dimension_numbers<[1], [0], [0], [1], [0, 0, 1, 1], [], []>} : vector<16x128xbf16>, vector<128x128xbf16>, vector<16x128xf32> -> vector<16x128xf32>
    %36 = vector.broadcast %34 : vector<1x128xf32> to vector<16x128xf32>
    %37 = arith.addf %35, %36 : vector<16x128xf32>
    %cst_29 = arith.constant 0.000000e+00 : f32
    %38 = vector.broadcast %cst_29 : f32 to vector<16x128xf32>
    %39 = arith.maximumf %37, %38 : vector<16x128xf32>
    %40 = arith.truncf %39 : vector<16x128xf32> to vector<16x128xbf16>
    %c0_30 = arith.constant 0 : index
    %c0_31 = arith.constant 0 : index
    %41 = vector.load %arg12[%c0_30, %c0_31] : memref<128x128xbf16, #tpu.memory_space<vmem>>, vector<128x128xbf16>
    %c0_32 = arith.constant 0 : index
    %c0_33 = arith.constant 0 : index
    %42 = vector.load %arg13[%c0_32, %c0_33] : memref<1x128xf32, #tpu.memory_space<vmem>>, vector<1x128xf32>
    %cst_34 = arith.constant dense<0.000000e+00> : vector<16x128xf32>
    %43 = tpu.matmul %40, %41, %cst_34 {dimension_numbers = #tpu.dot_dimension_numbers<[1], [0], [0], [1], [0, 0, 1, 1], [], []>} : vector<16x128xbf16>, vector<128x128xbf16>, vector<16x128xf32> -> vector<16x128xf32>
    %44 = vector.broadcast %42 : vector<1x128xf32> to vector<16x128xf32>
    %45 = arith.addf %43, %44 : vector<16x128xf32>
    %cst_35 = arith.constant 0.000000e+00 : f32
    %46 = vector.broadcast %cst_35 : f32 to vector<16x128xf32>
    %47 = arith.maximumf %45, %46 : vector<16x128xf32>
    %48 = arith.truncf %47 : vector<16x128xf32> to vector<16x128xbf16>
    %c0_36 = arith.constant 0 : index
    %c0_37 = arith.constant 0 : index
    %49 = vector.load %arg14[%c0_36, %c0_37] : memref<128x128xbf16, #tpu.memory_space<vmem>>, vector<128x128xbf16>
    %c0_38 = arith.constant 0 : index
    %c0_39 = arith.constant 0 : index
    %50 = vector.load %arg15[%c0_38, %c0_39] : memref<1x128xf32, #tpu.memory_space<vmem>>, vector<1x128xf32>
    %cst_40 = arith.constant dense<0.000000e+00> : vector<16x128xf32>
    %51 = tpu.matmul %48, %49, %cst_40 {dimension_numbers = #tpu.dot_dimension_numbers<[1], [0], [0], [1], [0, 0, 1, 1], [], []>} : vector<16x128xbf16>, vector<128x128xbf16>, vector<16x128xf32> -> vector<16x128xf32>
    %52 = vector.broadcast %50 : vector<1x128xf32> to vector<16x128xf32>
    %53 = arith.addf %51, %52 : vector<16x128xf32>
    %cst_41 = arith.constant 0.000000e+00 : f32
    %54 = vector.broadcast %cst_41 : f32 to vector<16x128xf32>
    %55 = arith.maximumf %53, %54 : vector<16x128xf32>
    %56 = arith.truncf %55 : vector<16x128xf32> to vector<16x128xbf16>
    %c0_42 = arith.constant 0 : index
    %c0_43 = arith.constant 0 : index
    %57 = vector.load %arg16[%c0_42, %c0_43] : memref<128x128xbf16, #tpu.memory_space<vmem>>, vector<128x128xbf16>
    %c0_44 = arith.constant 0 : index
    %c0_45 = arith.constant 0 : index
    %58 = vector.load %arg17[%c0_44, %c0_45] : memref<1x128xf32, #tpu.memory_space<vmem>>, vector<1x128xf32>
    %cst_46 = arith.constant dense<0.000000e+00> : vector<16x128xf32>
    %59 = tpu.matmul %56, %57, %cst_46 {dimension_numbers = #tpu.dot_dimension_numbers<[1], [0], [0], [1], [0, 0, 1, 1], [], []>} : vector<16x128xbf16>, vector<128x128xbf16>, vector<16x128xf32> -> vector<16x128xf32>
    %60 = vector.broadcast %58 : vector<1x128xf32> to vector<16x128xf32>
    %61 = arith.addf %59, %60 : vector<16x128xf32>
    %cst_47 = arith.constant 0.000000e+00 : f32
    %62 = vector.broadcast %cst_47 : f32 to vector<16x128xf32>
    %63 = arith.maximumf %61, %62 : vector<16x128xf32>
    %64 = arith.truncf %63 : vector<16x128xf32> to vector<16x128xbf16>
    %c0_48 = arith.constant 0 : index
    %c0_49 = arith.constant 0 : index
    %65 = vector.load %arg18[%c0_48, %c0_49] : memref<128x256xbf16, #tpu.memory_space<vmem>>, vector<128x256xbf16>
    %c0_50 = arith.constant 0 : index
    %c0_51 = arith.constant 0 : index
    %66 = vector.load %arg19[%c0_50, %c0_51] : memref<1x256xf32, #tpu.memory_space<vmem>>, vector<1x256xf32>
    %cst_52 = arith.constant dense<0.000000e+00> : vector<16x256xf32>
    %67 = tpu.matmul %64, %65, %cst_52 {dimension_numbers = #tpu.dot_dimension_numbers<[1], [0], [0], [1], [0, 0, 1, 1], [], []>} : vector<16x128xbf16>, vector<128x256xbf16>, vector<16x256xf32> -> vector<16x256xf32>
    %68 = vector.broadcast %66 : vector<1x256xf32> to vector<16x256xf32>
    %69 = arith.addf %67, %68 : vector<16x256xf32>
    %c0_53 = arith.constant 0 : index
    %c0_54 = arith.constant 0 : index
    %70 = vector.load %arg20[%c0_53, %c0_54] : memref<16x256xf32, #tpu.memory_space<vmem>>, vector<16x256xf32>
    tpu.vector_store %arg20[%c0_53, %c0_54], %69 {strides = array<i32>} : memref<16x256xf32, #tpu.memory_space<vmem>>, vector<16x256xf32>,
    return
  }
  func.func @transform_0(%arg0: i32) -> (i32, i32) {
    %c0_i32 = arith.constant 0 : i32
    %c0_i32_0 = arith.constant 0 : i32
    return %arg0, %c0_i32 : i32, i32
  }
  func.func @transform_1(%arg0: i32) -> (i32, i32) {
    %c0_i32 = arith.constant 0 : i32
    %c0_i32_0 = arith.constant 0 : i32
    %c0_i32_1 = arith.constant 0 : i32
    return %c0_i32, %c0_i32_0 : i32, i32
  }
  func.func @transform_2(%arg0: i32) -> (i32, i32) {
    %c0_i32 = arith.constant 0 : i32
    %c0_i32_0 = arith.constant 0 : i32
    %c0_i32_1 = arith.constant 0 : i32
    return %c0_i32, %c0_i32_0 : i32, i32
  }
  func.func @transform_3(%arg0: i32) -> (i32, i32) {
    %c0_i32 = arith.constant 0 : i32
    %c0_i32_0 = arith.constant 0 : i32
    %c0_i32_1 = arith.constant 0 : i32
    return %c0_i32, %c0_i32_0 : i32, i32
  }
  func.func @transform_4(%arg0: i32) -> (i32, i32) {
    %c0_i32 = arith.constant 0 : i32
    %c0_i32_0 = arith.constant 0 : i32
    %c0_i32_1 = arith.constant 0 : i32
    return %c0_i32, %c0_i32_0 : i32, i32
  }
  func.func @transform_5(%arg0: i32) -> (i32, i32) {
    %c0_i32 = arith.constant 0 : i32
    %c0_i32_0 = arith.constant 0 : i32
    %c0_i32_1 = arith.constant 0 : i32
    return %c0_i32, %c0_i32_0 : i32, i32
  }
  func.func @transform_6(%arg0: i32) -> (i32, i32) {
    %c0_i32 = arith.constant 0 : i32
    %c0_i32_0 = arith.constant 0 : i32
    %c0_i32_1 = arith.constant 0 : i32
    return %c0_i32, %c0_i32_0 : i32, i32
  }
  func.func @transform_7(%arg0: i32) -> (i32, i32) {
    %c0_i32 = arith.constant 0 : i32
    %c0_i32_0 = arith.constant 0 : i32
    %c0_i32_1 = arith.constant 0 : i32
    return %c0_i32, %c0_i32_0 : i32, i32
  }
  func.func @transform_8(%arg0: i32) -> (i32, i32) {
    %c0_i32 = arith.constant 0 : i32
    %c0_i32_0 = arith.constant 0 : i32
    %c0_i32_1 = arith.constant 0 : i32
    return %c0_i32, %c0_i32_0 : i32, i32
  }
  func.func @transform_9(%arg0: i32) -> (i32, i32) {
    %c0_i32 = arith.constant 0 : i32
    %c0_i32_0 = arith.constant 0 : i32
    %c0_i32_1 = arith.constant 0 : i32
    return %c0_i32, %c0_i32_0 : i32, i32
  }
  func.func @transform_10(%arg0: i32) -> (i32, i32) {
    %c0_i32 = arith.constant 0 : i32
    %c0_i32_0 = arith.constant 0 : i32
    %c0_i32_1 = arith.constant 0 : i32
    return %c0_i32, %c0_i32_0 : i32, i32
  }
  func.func @transform_11(%arg0: i32) -> (i32, i32) {
    %c0_i32 = arith.constant 0 : i32
    %c0_i32_0 = arith.constant 0 : i32
    %c0_i32_1 = arith.constant 0 : i32
    return %c0_i32, %c0_i32_0 : i32, i32
  }
  func.func @transform_12(%arg0: i32) -> (i32, i32) {
    %c0_i32 = arith.constant 0 : i32
    %c0_i32_0 = arith.constant 0 : i32
    %c0_i32_1 = arith.constant 0 : i32
    return %c0_i32, %c0_i32_0 : i32, i32
  }
  func.func @transform_13(%arg0: i32) -> (i32, i32) {
    %c0_i32 = arith.constant 0 : i32
    %c0_i32_0 = arith.constant 0 : i32
    %c0_i32_1 = arith.constant 0 : i32
    return %c0_i32, %c0_i32_0 : i32, i32
  }
  func.func @transform_14(%arg0: i32) -> (i32, i32) {
    %c0_i32 = arith.constant 0 : i32
    %c0_i32_0 = arith.constant 0 : i32
    %c0_i32_1 = arith.constant 0 : i32
    return %c0_i32, %c0_i32_0 : i32, i32
  }
  func.func @transform_15(%arg0: i32) -> (i32, i32) {
    %c0_i32 = arith.constant 0 : i32
    %c0_i32_0 = arith.constant 0 : i32
    %c0_i32_1 = arith.constant 0 : i32
    return %c0_i32, %c0_i32_0 : i32, i32
  }
  func.func @transform_16(%arg0: i32) -> (i32, i32) {
    %c0_i32 = arith.constant 0 : i32
    %c0_i32_0 = arith.constant 0 : i32
    %c0_i32_1 = arith.constant 0 : i32
    return %c0_i32, %c0_i32_0 : i32, i32
  }
  func.func @transform_17(%arg0: i32) -> (i32, i32) {
    %c0_i32 = arith.constant 0 : i32
    %c0_i32_0 = arith.constant 0 : i32
    %c0_i32_1 = arith.constant 0 : i32
    return %c0_i32, %c0_i32_0 : i32, i32
  }
  func.func @transform_18(%arg0: i32) -> (i32, i32) {
    %c0_i32 = arith.constant 0 : i32
    %c0_i32_0 = arith.constant 0 : i32
    %c0_i32_1 = arith.constant 0 : i32
    return %c0_i32, %c0_i32_0 : i32, i32
  }
  func.func @transform_19(%arg0: i32) -> (i32, i32) {
    %c0_i32 = arith.constant 0 : i32
    %c0_i32_0 = arith.constant 0 : i32
    return %arg0, %c0_i32 : i32, i32
  }
}

</mosaic_0001>

<llo_original>
// kernel: _lambda_.1
$region0: #{_lambda_.1}
  #allocation0 [shape = 'u32[]', space=smem, size = 0x4, offset = 0x4, fixed_abs, tag = 'smem constant byte address 0x4 - core index']
  #allocation1 [shape = 'u32[144,128]{1,0:T(1,128)}', space=vmem, size = 0x12000, scoped, tag = 'internal scratch']
  %s0 = inlined_call_operand.vmem [shape: bf16[16,256], index: 0, kind: input, shape index: {}]
  %s1 = inlined_call_operand.hbm [shape: bf16[256,128], index: 1, kind: input, shape index: {}]
  %s2 = inlined_call_operand.hbm [shape: f32[1,128], index: 2, kind: input, shape index: {}]
  %s3 = inlined_call_operand.hbm [shape: bf16[128,128], index: 3, kind: input, shape index: {}]
  %s4 = inlined_call_operand.hbm [shape: f32[1,128], index: 4, kind: input, shape index: {}]
  %s5 = inlined_call_operand.vmem [shape: bf16[128,128], index: 5, kind: input, shape index: {}]
  %s6 = inlined_call_operand.vmem [shape: f32[1,128], index: 6, kind: input, shape index: {}]
  %s7 = inlined_call_operand.hbm [shape: bf16[128,128], index: 7, kind: input, shape index: {}]
  %s8 = inlined_call_operand.hbm [shape: f32[1,128], index: 8, kind: input, shape index: {}]
  %s9 = inlined_call_operand.hbm [shape: bf16[128,128], index: 9, kind: input, shape index: {}]
  %s10 = inlined_call_operand.hbm [shape: f32[1,128], index: 10, kind: input, shape index: {}]
  %s11 = inlined_call_operand.hbm [shape: bf16[128,128], index: 11, kind: input, shape index: {}]
  %s12 = inlined_call_operand.vmem [shape: f32[1,128], index: 12, kind: input, shape index: {}]
  %s13 = inlined_call_operand.hbm [shape: bf16[128,128], index: 13, kind: input, shape index: {}]
  %s14 = inlined_call_operand.vmem [shape: f32[1,128], index: 14, kind: input, shape index: {}]
  %s15 = inlined_call_operand.hbm [shape: bf16[128,128], index: 15, kind: input, shape index: {}]
  %s16 = inlined_call_operand.vmem [shape: f32[1,128], index: 16, kind: input, shape index: {}]
  %s17 = inlined_call_operand.hbm [shape: bf16[128,256], index: 17, kind: input, shape index: {}]
  %s18 = inlined_call_operand.vmem [shape: f32[1,256], index: 18, kind: input, shape index: {}]
  %s19 = inlined_call_operand.vmem [shape: f32[16,256], index: 19, kind: output, shape index: {}]
  %s20 = sld [smem:[#allocation0]]
  $region134: #{_lambda_.1} parent=0
    _
  %s22 = ssub.s32 1, %s20
  %s23 = scalar_select 0, %s22, %s20
  $region1: #{_lambda_.1} parent=0
    #allocation2 [shape = 'u8[65536]{0}', space=vmem, size = 0x10000, scoped, tag = 'input window, operand 1, single buffered']
    #allocation3 [shape = 's32[1]{0}', space=sflag, size = 0x4, scoped, tag = 'scoped memory for _lambda_.1']
    #allocation4 [shape = 'u8[512]{0}', space=vmem, size = 0x400, scoped, tag = 'input window, operand 2, single buffered']
    #allocation5 [shape = 's32[1]{0}', space=sflag, size = 0x4, scoped, tag = 'scoped memory for _lambda_.1']
    #allocation6 [shape = 'u8[32768]{0}', space=vmem, size = 0x8000, scoped, tag = 'input window, operand 3, single buffered']
    #allocation7 [shape = 'u8[512]{0}', space=vmem, size = 0x400, scoped, tag = 'input window, operand 4, single buffered']
    #allocation8 [shape = 's32[1]{0}', space=sflag, size = 0x4, scoped, tag = 'scoped memory for _lambda_.1']
    #allocation9 [shape = 'u8[32768]{0}', space=vmem, size = 0x8000, scoped, tag = 'input window, operand 7, single buffered']
    #allocation10 [shape = 'u8[512]{0}', space=vmem, size = 0x400, scoped, tag = 'input window, operand 8, single buffered']
    #allocation11 [shape = 's32[1]{0}', space=sflag, size = 0x4, scoped, tag = 'scoped memory for _lambda_.1']
    #allocation12 [shape = 'u8[32768]{0}', space=vmem, size = 0x8000, scoped, tag = 'input window, operand 9, single buffered']
    #allocation13 [shape = 'u8[512]{0}', space=vmem, size = 0x400, scoped, tag = 'input window, operand 10, single buffered']
    #allocation14 [shape = 's32[1]{0}', space=sflag, size = 0x4, scoped, tag = 'scoped memory for _lambda_.1']
    #allocation15 [shape = 'u8[32768]{0}', space=vmem, size = 0x8000, scoped, tag = 'input window, operand 11, single buffered']
    #allocation16 [shape = 'u8[32768]{0}', space=vmem, size = 0x8000, scoped, tag = 'input window, operand 13, single buffered']
    #allocation17 [shape = 's32[1]{0}', space=sflag, size = 0x4, scoped, tag = 'scoped memory for _lambda_.1']
    #allocation18 [shape = 'u8[32768]{0}', space=vmem, size = 0x8000, scoped, tag = 'input window, operand 15, single buffered']
    #allocation19 [shape = 'u8[65536]{0}', space=vmem, size = 0x10000, scoped, tag = 'input window, operand 17, single buffered']
    #allocation20 [shape = 's32[1]{0}', space=sflag, size = 0x4, scoped, tag = 'scoped memory for _lambda_.1']
    %24 = vsyncpa [#allocation3], 0
    %25 = vsyncpa [#allocation5], 0
    %26 = vsyncpa [#allocation8], 0
    %27 = vsyncpa [#allocation11], 0
    %28 = vsyncpa [#allocation14], 0
    %29 = vsyncpa [#allocation17], 0
    %30 = vsyncpa [#allocation20], 0
    // Predicated region
    $region2: #{_lambda_.1} parent=1 // pred_check
      _
    $region3: #{_lambda_.1} parent=1 // pred_check_branch
      %32 = sbr.rel (0) target = $region5
    $region4: #{_lambda_.1} parent=1 // pred_region
      _
    $region5: #{_lambda_.1} parent=1 // pred_fallthru
      _
    // Predicated region
    $region6: #{_lambda_.1} parent=1 // pred_check
      _
    $region7: #{_lambda_.1} parent=1 // pred_check_branch
      %34 = sbr.rel (0) target = $region9
    $region8: #{_lambda_.1} parent=1 // pred_region
      %s36 = ssub.s32 2048, 2048
      %37 = vsyncadd [#allocation3], %s36
      %s38 = sshll.u32 [#allocation2], 4
      %s39 = int_to_ptr.vmem [resolvable:$true] %s38
      %44 = dma.hbm_to_vmem [thread:$0]  %s1, 2048, %s39, [#allocation3], 64, 64, 4
    $region9: #{_lambda_.1} parent=1 // pred_fallthru
      _
    // Predicated region
    $region10: #{_lambda_.1} parent=1 // pred_check
      _
    $region11: #{_lambda_.1} parent=1 // pred_check_branch
      %46 = sbr.rel (0) target = $region13
    $region12: #{_lambda_.1} parent=1 // pred_region
      %s48 = ssub.s32 16, 16
      %49 = vsyncadd [#allocation5], %s48
      %s51 = sshll.u32 [#allocation4], 4
      %s52 = int_to_ptr.vmem [resolvable:$true] %s51
      %54 = dma.hbm_to_vmem [thread:$0]  %s2, 16, %s52, [#allocation5]
    $region13: #{_lambda_.1} parent=1 // pred_fallthru
      _
    // Predicated region
    $region14: #{_lambda_.1} parent=1 // pred_check
      _
    $region15: #{_lambda_.1} parent=1 // pred_check_branch
      %56 = sbr.rel (0) target = $region17
    $region16: #{_lambda_.1} parent=1 // pred_region
      %s58 = ssub.s32 1024, 1024
      %59 = vsyncadd [#allocation5], %s58
      %s60 = sshll.u32 [#allocation6], 4
      %s61 = int_to_ptr.vmem [resolvable:$true] %s60
      %66 = dma.hbm_to_vmem [thread:$0]  %s3, 1024, %s61, [#allocation5], 64, 64, 4
    $region17: #{_lambda_.1} parent=1 // pred_fallthru
      _
    // Predicated region
    $region18: #{_lambda_.1} parent=1 // pred_check
      _
    $region19: #{_lambda_.1} parent=1 // pred_check_branch
      %68 = sbr.rel (0) target = $region21
    $region20: #{_lambda_.1} parent=1 // pred_region
      %s70 = ssub.s32 16, 16
      %71 = vsyncadd [#allocation8], %s70
      %s73 = sshll.u32 [#allocation7], 4
      %s74 = int_to_ptr.vmem [resolvable:$true] %s73
      %76 = dma.hbm_to_vmem [thread:$0]  %s4, 16, %s74, [#allocation8]
    $region21: #{_lambda_.1} parent=1 // pred_fallthru
      _
    // Predicated region
    $region22: #{_lambda_.1} parent=1 // pred_check
      _
    $region23: #{_lambda_.1} parent=1 // pred_check_branch
      %78 = sbr.rel (0) target = $region25
    $region24: #{_lambda_.1} parent=1 // pred_region
      _
    $region25: #{_lambda_.1} parent=1 // pred_fallthru
      _
    // Predicated region
    $region26: #{_lambda_.1} parent=1 // pred_check
      _
    $region27: #{_lambda_.1} parent=1 // pred_check_branch
      %80 = sbr.rel (0) target = $region29
    $region28: #{_lambda_.1} parent=1 // pred_region
      _
    $region29: #{_lambda_.1} parent=1 // pred_fallthru
      _
    // Predicated region
    $region30: #{_lambda_.1} parent=1 // pred_check
      _
    $region31: #{_lambda_.1} parent=1 // pred_check_branch
      %82 = sbr.rel (0) target = $region33
    $region32: #{_lambda_.1} parent=1 // pred_region
      %s84 = ssub.s32 1024, 1024
      %85 = vsyncadd [#allocation8], %s84
      %s86 = sshll.u32 [#allocation9], 4
      %s87 = int_to_ptr.vmem [resolvable:$true] %s86
      %92 = dma.hbm_to_vmem [thread:$0]  %s7, 1024, %s87, [#allocation8], 64, 64, 4
    $region33: #{_lambda_.1} parent=1 // pred_fallthru
      _
    // Predicated region
    $region34: #{_lambda_.1} parent=1 // pred_check
      _
    $region35: #{_lambda_.1} parent=1 // pred_check_branch
      %94 = sbr.rel (0) target = $region37
    $region36: #{_lambda_.1} parent=1 // pred_region
      %s96 = ssub.s32 16, 16
      %97 = vsyncadd [#allocation11], %s96
      %s99 = sshll.u32 [#allocation10], 4
      %s100 = int_to_ptr.vmem [resolvable:$true] %s99
      %102 = dma.hbm_to_vmem [thread:$0]  %s8, 16, %s100, [#allocation11]
    $region37: #{_lambda_.1} parent=1 // pred_fallthru
      _
    // Predicated region
    $region38: #{_lambda_.1} parent=1 // pred_check
      _
    $region39: #{_lambda_.1} parent=1 // pred_check_branch
      %104 = sbr.rel (0) target = $region41
    $region40: #{_lambda_.1} parent=1 // pred_region
      %s106 = ssub.s32 1024, 1024
      %107 = vsyncadd [#allocation11], %s106
      %s108 = sshll.u32 [#allocation12], 4
      %s109 = int_to_ptr.vmem [resolvable:$true] %s108
      %114 = dma.hbm_to_vmem [thread:$0]  %s9, 1024, %s109, [#allocation11], 64, 64, 4
    $region41: #{_lambda_.1} parent=1 // pred_fallthru
      _
    // Predicated region
    $region42: #{_lambda_.1} parent=1 // pred_check
      _
    $region43: #{_lambda_.1} parent=1 // pred_check_branch
      %116 = sbr.rel (0) target = $region45
    $region44: #{_lambda_.1} parent=1 // pred_region
      %s118 = ssub.s32 16, 16
      %119 = vsyncadd [#allocation14], %s118
      %s121 = sshll.u32 [#allocation13], 4
      %s122 = int_to_ptr.vmem [resolvable:$true] %s121
      %124 = dma.hbm_to_vmem [thread:$0]  %s10, 16, %s122, [#allocation14]
    $region45: #{_lambda_.1} parent=1 // pred_fallthru
      _
    // Predicated region
    $region46: #{_lambda_.1} parent=1 // pred_check
      _
    $region47: #{_lambda_.1} parent=1 // pred_check_branch
      %126 = sbr.rel (0) target = $region49
    $region48: #{_lambda_.1} parent=1 // pred_region
      %s128 = ssub.s32 1024, 1024
      %129 = vsyncadd [#allocation14], %s128
      %s130 = sshll.u32 [#allocation15], 4
      %s131 = int_to_ptr.vmem [resolvable:$true] %s130
      %136 = dma.hbm_to_vmem [thread:$0]  %s11, 1024, %s131, [#allocation14], 64, 64, 4
    $region49: #{_lambda_.1} parent=1 // pred_fallthru
      _
    // Predicated region
    $region50: #{_lambda_.1} parent=1 // pred_check
      _
    $region51: #{_lambda_.1} parent=1 // pred_check_branch
      %138 = sbr.rel (0) target = $region53
    $region52: #{_lambda_.1} parent=1 // pred_region
      _
    $region53: #{_lambda_.1} parent=1 // pred_fallthru
      _
    // Predicated region
    $region54: #{_lambda_.1} parent=1 // pred_check
      _
    $region55: #{_lambda_.1} parent=1 // pred_check_branch
      %140 = sbr.rel (0) target = $region57
    $region56: #{_lambda_.1} parent=1 // pred_region
      %s142 = ssub.s32 1024, 1024
      %143 = vsyncadd [#allocation17], %s142
      %s144 = sshll.u32 [#allocation16], 4
      %s145 = int_to_ptr.vmem [resolvable:$true] %s144
      %150 = dma.hbm_to_vmem [thread:$0]  %s13, 1024, %s145, [#allocation17], 64, 64, 4
    $region57: #{_lambda_.1} parent=1 // pred_fallthru
      _
    // Predicated region
    $region58: #{_lambda_.1} parent=1 // pred_check
      _
    $region59: #{_lambda_.1} parent=1 // pred_check_branch
      %152 = sbr.rel (0) target = $region61
    $region60: #{_lambda_.1} parent=1 // pred_region
      _
    $region61: #{_lambda_.1} parent=1 // pred_fallthru
      _
    // Predicated region
    $region62: #{_lambda_.1} parent=1 // pred_check
      _
    $region63: #{_lambda_.1} parent=1 // pred_check_branch
      %154 = sbr.rel (0) target = $region65
    $region64: #{_lambda_.1} parent=1 // pred_region
      %s156 = ssub.s32 1024, 1024
      %157 = vsyncadd [#allocation17], %s156
      %s158 = sshll.u32 [#allocation18], 4
      %s159 = int_to_ptr.vmem [resolvable:$true] %s158
      %164 = dma.hbm_to_vmem [thread:$0]  %s15, 1024, %s159, [#allocation17], 64, 64, 4
    $region65: #{_lambda_.1} parent=1 // pred_fallthru
      _
    // Predicated region
    $region66: #{_lambda_.1} parent=1 // pred_check
      _
    $region67: #{_lambda_.1} parent=1 // pred_check_branch
      %166 = sbr.rel (0) target = $region69
    $region68: #{_lambda_.1} parent=1 // pred_region
      _
    $region69: #{_lambda_.1} parent=1 // pred_fallthru
      _
    // Predicated region
    $region70: #{_lambda_.1} parent=1 // pred_check
      _
    $region71: #{_lambda_.1} parent=1 // pred_check_branch
      %168 = sbr.rel (0) target = $region73
    $region72: #{_lambda_.1} parent=1 // pred_region
      %s170 = ssub.s32 2048, 2048
      %171 = vsyncadd [#allocation20], %s170
      %s172 = sshll.u32 [#allocation19], 4
      %s173 = int_to_ptr.vmem [resolvable:$true] %s172
      %178 = dma.hbm_to_vmem [thread:$0]  %s17, 2048, %s173, [#allocation20], 128, 128, 8
    $region73: #{_lambda_.1} parent=1 // pred_fallthru
      _
    // Predicated region
    $region74: #{_lambda_.1} parent=1 // pred_check
      _
    $region75: #{_lambda_.1} parent=1 // pred_check_branch
      %180 = sbr.rel (0) target = $region77
    $region76: #{_lambda_.1} parent=1 // pred_region
      _
    $region77: #{_lambda_.1} parent=1 // pred_fallthru
      _
    // Predicated region
    $region78: #{_lambda_.1} parent=1 // pred_check
      _
    $region79: #{_lambda_.1} parent=1 // pred_check_branch
      %182 = sbr.rel (0) target = $region81
    $region80: #{_lambda_.1} parent=1 // pred_region
      %183 = dma.done [#allocation3], 2048
    $region81: #{_lambda_.1} parent=1 // pred_fallthru
      _
    // Predicated region
    $region82: #{_lambda_.1} parent=1 // pred_check
      _
    $region83: #{_lambda_.1} parent=1 // pred_check_branch
      %185 = sbr.rel (0) target = $region85
    $region84: #{_lambda_.1} parent=1 // pred_region
      %186 = dma.done [#allocation5], 16
    $region85: #{_lambda_.1} parent=1 // pred_fallthru
      _
    // Predicated region
    $region86: #{_lambda_.1} parent=1 // pred_check
      _
    $region87: #{_lambda_.1} parent=1 // pred_check_branch
      %188 = sbr.rel (0) target = $region89
    $region88: #{_lambda_.1} parent=1 // pred_region
      %189 = dma.done [#allocation5], 1024
    $region89: #{_lambda_.1} parent=1 // pred_fallthru
      _
    // Predicated region
    $region90: #{_lambda_.1} parent=1 // pred_check
      _
    $region91: #{_lambda_.1} parent=1 // pred_check_branch
      %191 = sbr.rel (0) target = $region93
    $region92: #{_lambda_.1} parent=1 // pred_region
      %192 = dma.done [#allocation8], 16
    $region93: #{_lambda_.1} parent=1 // pred_fallthru
      _
    // Predicated region
    $region94: #{_lambda_.1} parent=1 // pred_check
      _
    $region95: #{_lambda_.1} parent=1 // pred_check_branch
      %194 = sbr.rel (0) target = $region97
    $region96: #{_lambda_.1} parent=1 // pred_region
      %195 = dma.done [#allocation8], 1024
    $region97: #{_lambda_.1} parent=1 // pred_fallthru
      _
    // Predicated region
    $region98: #{_lambda_.1} parent=1 // pred_check
      _
    $region99: #{_lambda_.1} parent=1 // pred_check_branch
      %197 = sbr.rel (0) target = $region101
    $region100: #{_lambda_.1} parent=1 // pred_region
      %198 = dma.done [#allocation11], 16
    $region101: #{_lambda_.1} parent=1 // pred_fallthru
      _
    // Predicated region
    $region102: #{_lambda_.1} parent=1 // pred_check
      _
    $region103: #{_lambda_.1} parent=1 // pred_check_branch
      %200 = sbr.rel (0) target = $region105
    $region104: #{_lambda_.1} parent=1 // pred_region
      %201 = dma.done [#allocation11], 1024
    $region105: #{_lambda_.1} parent=1 // pred_fallthru
      _
    // Predicated region
    $region106: #{_lambda_.1} parent=1 // pred_check
      _
    $region107: #{_lambda_.1} parent=1 // pred_check_branch
      %203 = sbr.rel (0) target = $region109
    $region108: #{_lambda_.1} parent=1 // pred_region
      %204 = dma.done [#allocation14], 16
    $region109: #{_lambda_.1} parent=1 // pred_fallthru
      _
    // Predicated region
    $region110: #{_lambda_.1} parent=1 // pred_check
      _
    $region111: #{_lambda_.1} parent=1 // pred_check_branch
      %206 = sbr.rel (0) target = $region113
    $region112: #{_lambda_.1} parent=1 // pred_region
      %207 = dma.done [#allocation14], 1024
    $region113: #{_lambda_.1} parent=1 // pred_fallthru
      _
    // Predicated region
    $region114: #{_lambda_.1} parent=1 // pred_check
      _
    $region115: #{_lambda_.1} parent=1 // pred_check_branch
      %209 = sbr.rel (0) target = $region117
    $region116: #{_lambda_.1} parent=1 // pred_region
      %210 = dma.done [#allocation17], 1024
    $region117: #{_lambda_.1} parent=1 // pred_fallthru
      _
    // Predicated region
    $region118: #{_lambda_.1} parent=1 // pred_check
      _
    $region119: #{_lambda_.1} parent=1 // pred_check_branch
      %212 = sbr.rel (0) target = $region121
    $region120: #{_lambda_.1} parent=1 // pred_region
      %213 = dma.done [#allocation17], 1024
    $region121: #{_lambda_.1} parent=1 // pred_fallthru
      _
    // Predicated region
    $region122: #{_lambda_.1} parent=1 // pred_check
      _
    $region123: #{_lambda_.1} parent=1 // pred_check_branch
      %215 = sbr.rel (0) target = $region125
    $region124: #{_lambda_.1} parent=1 // pred_region
      %216 = dma.done [#allocation20], 2048
    $region125: #{_lambda_.1} parent=1 // pred_fallthru
      _
    %v218 = vld [vmem:[%s0] sm:$0xff]
    %v219 = vld [vmem:[%s0 + $0x8] sm:$0xff]
    %v220 = vld [vmem:[#allocation2] sm:$0xf]
    %v221 = vld [vmem:[#allocation2 + $0x4] sm:$0xf]
    %v222 = vld [vmem:[#allocation2 + $0x8] sm:$0xf]
    %v223 = vld [vmem:[#allocation2 + $0xc] sm:$0xf]
    %v224 = vld [vmem:[#allocation2 + $0x10] sm:$0xf]
    %v225 = vld [vmem:[#allocation2 + $0x14] sm:$0xf]
    %v226 = vld [vmem:[#allocation2 + $0x18] sm:$0xf]
    %v227 = vld [vmem:[#allocation2 + $0x1c] sm:$0xf]
    %v228 = vld [vmem:[#allocation2 + $0x20] sm:$0xf]
    %v229 = vld [vmem:[#allocation2 + $0x24] sm:$0xf]
    %v230 = vld [vmem:[#allocation2 + $0x28] sm:$0xf]
    %v231 = vld [vmem:[#allocation2 + $0x2c] sm:$0xf]
    %v232 = vld [vmem:[#allocation2 + $0x30] sm:$0xf]
    %v233 = vld [vmem:[#allocation2 + $0x34] sm:$0xf]
    %v234 = vld [vmem:[#allocation2 + $0x38] sm:$0xf]
    %v235 = vld [vmem:[#allocation2 + $0x3c] sm:$0xf]
    %v236 = vld [vmem:[#allocation2 + $0x40] sm:$0xf]
    %v237 = vld [vmem:[#allocation2 + $0x44] sm:$0xf]
    %v238 = vld [vmem:[#allocation2 + $0x48] sm:$0xf]
    %v239 = vld [vmem:[#allocation2 + $0x4c] sm:$0xf]
    %v240 = vld [vmem:[#allocation2 + $0x50] sm:$0xf]
    %v241 = vld [vmem:[#allocation2 + $0x54] sm:$0xf]
    %v242 = vld [vmem:[#allocation2 + $0x58] sm:$0xf]
    %v243 = vld [vmem:[#allocation2 + $0x5c] sm:$0xf]
    %v244 = vld [vmem:[#allocation2 + $0x60] sm:$0xf]
    %v245 = vld [vmem:[#allocation2 + $0x64] sm:$0xf]
    %v246 = vld [vmem:[#allocation2 + $0x68] sm:$0xf]
    %v247 = vld [vmem:[#allocation2 + $0x6c] sm:$0xf]
    %v248 = vld [vmem:[#allocation2 + $0x70] sm:$0xf]
    %v249 = vld [vmem:[#allocation2 + $0x74] sm:$0xf]
    %v250 = vld [vmem:[#allocation2 + $0x78] sm:$0xf]
    %v251 = vld [vmem:[#allocation2 + $0x7c] sm:$0xf]
    %v252 = vld [vmem:[#allocation4] sm:$0x1]
    %v254 = vlaneseq
    %v255 = vshrl.u32 %v254, 7
    %v256 = vsub.s32 0, %v255
    %v257 = vrot.slane %v252, %v256
    %v261 = vunpack.c.l.b16 %v218
    %v262 = vunpack.c.h.b16 %v218
    %v263 = vunpack.c.l.b16 %v219
    %v264 = vunpack.c.h.b16 %v219
    %v265 = vpack.c.b16 %v263, %v261
    %v266 = vpack.c.b16 %v264, %v262
    %v301 = vunpack.c.l.b16 %v220
    %v302 = vunpack.c.l.b16 %v221
    %v303 = vunpack.c.l.b16 %v222
    %v304 = vunpack.c.l.b16 %v223
    %v305 = vunpack.c.l.b16 %v224
    %v306 = vunpack.c.l.b16 %v225
    %v307 = vunpack.c.l.b16 %v226
    %v308 = vunpack.c.l.b16 %v227
    %v309 = vunpack.c.l.b16 %v228
    %v310 = vunpack.c.l.b16 %v229
    %v311 = vunpack.c.l.b16 %v230
    %v312 = vunpack.c.l.b16 %v231
    %v313 = vunpack.c.l.b16 %v232
    %v314 = vunpack.c.l.b16 %v233
    %v315 = vunpack.c.l.b16 %v234
    %v316 = vunpack.c.l.b16 %v235
    %v317 = vunpack.c.l.b16 %v236
    %v318 = vunpack.c.l.b16 %v237
    %v319 = vunpack.c.l.b16 %v238
    %v320 = vunpack.c.l.b16 %v239
    %v321 = vunpack.c.l.b16 %v240
    %v322 = vunpack.c.l.b16 %v241
    %v323 = vunpack.c.l.b16 %v242
    %v324 = vunpack.c.l.b16 %v243
    %v325 = vunpack.c.l.b16 %v244
    %v326 = vunpack.c.l.b16 %v245
    %v327 = vunpack.c.l.b16 %v246
    %v328 = vunpack.c.l.b16 %v247
    %v329 = vunpack.c.l.b16 %v248
    %v330 = vunpack.c.l.b16 %v249
    %v331 = vunpack.c.l.b16 %v250
    %v332 = vunpack.c.l.b16 %v251
    %v333 = vpack.c.b16 %v302, %v301
    %v334 = vpack.c.b16 %v304, %v303
    %v335 = vpack.c.b16 %v306, %v305
    %v336 = vpack.c.b16 %v308, %v307
    %v337 = vpack.c.b16 %v310, %v309
    %v338 = vpack.c.b16 %v312, %v311
    %v339 = vpack.c.b16 %v314, %v313
    %v340 = vpack.c.b16 %v316, %v315
    %v341 = vpack.c.b16 %v318, %v317
    %v342 = vpack.c.b16 %v320, %v319
    %v343 = vpack.c.b16 %v322, %v321
    %v344 = vpack.c.b16 %v324, %v323
    %v345 = vpack.c.b16 %v326, %v325
    %v346 = vpack.c.b16 %v328, %v327
    %v347 = vpack.c.b16 %v330, %v329
    %v348 = vpack.c.b16 %v332, %v331
    %365 = vmatprep.subr.bf16.mxu0 0
    %366 = vmatpush1.bf16.msra.mxu0 %v333
    %367 = vmatprep.subr.bf16.mxu0 0
    %368 = vmatpush1.bf16.msra.mxu0 %v334
    %369 = vmatprep.subr.bf16.mxu0 0
    %370 = vmatpush1.bf16.msra.mxu0 %v335
    %371 = vmatprep.subr.bf16.mxu0 0
    %372 = vmatpush1.bf16.msra.mxu0 %v336
    %373 = vmatprep.subr.bf16.mxu0 0
    %374 = vmatpush1.bf16.msra.mxu0 %v337
    %375 = vmatprep.subr.bf16.mxu0 0
    %376 = vmatpush1.bf16.msra.mxu0 %v338
    %377 = vmatprep.subr.bf16.mxu0 0
    %378 = vmatpush1.bf16.msra.mxu0 %v339
    %379 = vmatprep.subr.bf16.mxu0 0
    %380 = vmatpush1.bf16.msra.mxu0 %v340
    %381 = vmatprep.subr.bf16.mxu0 0
    %382 = vmatpush1.bf16.msra.mxu0 %v341
    %383 = vmatprep.subr.bf16.mxu0 0
    %384 = vmatpush1.bf16.msra.mxu0 %v342
    %385 = vmatprep.subr.bf16.mxu0 0
    %386 = vmatpush1.bf16.msra.mxu0 %v343
    %387 = vmatprep.subr.bf16.mxu0 0
    %388 = vmatpush1.bf16.msra.mxu0 %v344
    %389 = vmatprep.subr.bf16.mxu0 0
    %390 = vmatpush1.bf16.msra.mxu0 %v345
    %391 = vmatprep.subr.bf16.mxu0 0
    %392 = vmatpush1.bf16.msra.mxu0 %v346
    %393 = vmatprep.subr.bf16.mxu0 0
    %394 = vmatpush1.bf16.msra.mxu0 %v347
    %395 = vmatprep.subr.bf16.mxu0 0
    %396 = vmatpush1.bf16.msra.mxu0 %v348
    %397 = vmatprep.mubr.bf16.mxu0 %v266
    %398 = vmatmul.mubr.bf16.gmra.mrb[0].mxu0 %v265
    %v399 = vpop.f32.mrb[0].mxu0
    %v400 = vadd.f32 %v257, %v399
    %v401 = vpop.f32.mrb[0].mxu0
    %v402 = vpop.f32.mrb[0].mxu0
    %v403 = vadd.f32 %v257, %v402
    %v404 = vpop.f32.mrb[0].mxu0
    %405 = vdwg.mxu0
    %v406 = vmax.f32 %v400, 0.0
    %v407 = vmax.f32 %v403, 0.0
    %v408 = vpack.c.bf16 %v407, %v406
    %v409 = vld [vmem:[#allocation6] sm:$0xf]
    %v410 = vld [vmem:[#allocation6 + $0x4] sm:$0xf]
    %v411 = vld [vmem:[#allocation6 + $0x8] sm:$0xf]
    %v412 = vld [vmem:[#allocation6 + $0xc] sm:$0xf]
    %v413 = vld [vmem:[#allocation6 + $0x10] sm:$0xf]
    %v414 = vld [vmem:[#allocation6 + $0x14] sm:$0xf]
    %v415 = vld [vmem:[#allocation6 + $0x18] sm:$0xf]
    %v416 = vld [vmem:[#allocation6 + $0x1c] sm:$0xf]
    %v417 = vld [vmem:[#allocation6 + $0x20] sm:$0xf]
    %v418 = vld [vmem:[#allocation6 + $0x24] sm:$0xf]
    %v419 = vld [vmem:[#allocation6 + $0x28] sm:$0xf]
    %v420 = vld [vmem:[#allocation6 + $0x2c] sm:$0xf]
    %v421 = vld [vmem:[#allocation6 + $0x30] sm:$0xf]
    %v422 = vld [vmem:[#allocation6 + $0x34] sm:$0xf]
    %v423 = vld [vmem:[#allocation6 + $0x38] sm:$0xf]
    %v424 = vld [vmem:[#allocation6 + $0x3c] sm:$0xf]
    %v425 = vld [vmem:[#allocation7] sm:$0x1]
    %v427 = vlaneseq
    %v428 = vshrl.u32 %v427, 7
    %v429 = vsub.s32 0, %v428
    %v430 = vrot.slane %v425, %v429
    %v448 = vunpack.c.l.b16 %v409
    %v449 = vunpack.c.l.b16 %v410
    %v450 = vunpack.c.l.b16 %v411
    %v451 = vunpack.c.l.b16 %v412
    %v452 = vunpack.c.l.b16 %v413
    %v453 = vunpack.c.l.b16 %v414
    %v454 = vunpack.c.l.b16 %v415
    %v455 = vunpack.c.l.b16 %v416
    %v456 = vunpack.c.l.b16 %v417
    %v457 = vunpack.c.l.b16 %v418
    %v458 = vunpack.c.l.b16 %v419
    %v459 = vunpack.c.l.b16 %v420
    %v460 = vunpack.c.l.b16 %v421
    %v461 = vunpack.c.l.b16 %v422
    %v462 = vunpack.c.l.b16 %v423
    %v463 = vunpack.c.l.b16 %v424
    %v464 = vpack.c.b16 %v449, %v448
    %v465 = vpack.c.b16 %v451, %v450
    %v466 = vpack.c.b16 %v453, %v452
    %v467 = vpack.c.b16 %v455, %v454
    %v468 = vpack.c.b16 %v457, %v456
    %v469 = vpack.c.b16 %v459, %v458
    %v470 = vpack.c.b16 %v461, %v460
    %v471 = vpack.c.b16 %v463, %v462
    %480 = vmatprep.subr.bf16.mxu0 0
    %481 = vmatpush1.bf16.msra.mxu0 %v464
    %482 = vmatprep.subr.bf16.mxu0 0
    %483 = vmatpush1.bf16.msra.mxu0 %v465
    %484 = vmatprep.subr.bf16.mxu0 0
    %485 = vmatpush1.bf16.msra.mxu0 %v466
    %486 = vmatprep.subr.bf16.mxu0 0
    %487 = vmatpush1.bf16.msra.mxu0 %v467
    %488 = vmatprep.subr.bf16.mxu0 0
    %489 = vmatpush1.bf16.msra.mxu0 %v468
    %490 = vmatprep.subr.bf16.mxu0 0
    %491 = vmatpush1.bf16.msra.mxu0 %v469
    %492 = vmatprep.subr.bf16.mxu0 0
    %493 = vmatpush1.bf16.msra.mxu0 %v470
    %494 = vmatprep.subr.bf16.mxu0 0
    %495 = vmatpush1.bf16.msra.mxu0 %v471
    %496 = vmatprep.subr.bf16.mxu0 0
    %497 = vmatpush1.bf16.msra.mxu0 0
    %498 = vmatprep.subr.bf16.mxu0 0
    %499 = vmatpush1.bf16.msra.mxu0 0
    %500 = vmatprep.subr.bf16.mxu0 0
    %501 = vmatpush1.bf16.msra.mxu0 0
    %502 = vmatprep.subr.bf16.mxu0 0
    %503 = vmatpush1.bf16.msra.mxu0 0
    %504 = vmatprep.subr.bf16.mxu0 0
    %505 = vmatpush1.bf16.msra.mxu0 0
    %506 = vmatprep.subr.bf16.mxu0 0
    %507 = vmatpush1.bf16.msra.mxu0 0
    %508 = vmatprep.subr.bf16.mxu0 0
    %509 = vmatpush1.bf16.msra.mxu0 0
    %510 = vmatprep.subr.bf16.mxu0 0
    %511 = vmatpush1.bf16.msra.mxu0 0
    %512 = vmatprep.mubr.bf16.mxu0 0
    %513 = vmatmul.mubr.bf16.gmra.mrb[0].mxu0 %v408
    %v514 = vpop.f32.mrb[0].mxu0
    %v515 = vadd.f32 %v430, %v514
    %v516 = vpop.f32.mrb[0].mxu0
    %v517 = vpop.f32.mrb[0].mxu0
    %v518 = vadd.f32 %v430, %v517
    %v519 = vpop.f32.mrb[0].mxu0
    %520 = vdwg.mxu0
    %v521 = vmax.f32 %v515, 0.0
    %v522 = vmax.f32 %v518, 0.0
    %v523 = vpack.c.bf16 %v522, %v521
    %v524 = vld [vmem:[%s5] sm:$0xf]
    %v525 = vld [vmem:[%s5 + $0x4] sm:$0xf]
    %v526 = vld [vmem:[%s5 + $0x8] sm:$0xf]
    %v527 = vld [vmem:[%s5 + $0xc] sm:$0xf]
    %v528 = vld [vmem:[%s5 + $0x10] sm:$0xf]
    %v529 = vld [vmem:[%s5 + $0x14] sm:$0xf]
    %v530 = vld [vmem:[%s5 + $0x18] sm:$0xf]
    %v531 = vld [vmem:[%s5 + $0x1c] sm:$0xf]
    %v532 = vld [vmem:[%s5 + $0x20] sm:$0xf]
    %v533 = vld [vmem:[%s5 + $0x24] sm:$0xf]
    %v534 = vld [vmem:[%s5 + $0x28] sm:$0xf]
    %v535 = vld [vmem:[%s5 + $0x2c] sm:$0xf]
    %v536 = vld [vmem:[%s5 + $0x30] sm:$0xf]
    %v537 = vld [vmem:[%s5 + $0x34] sm:$0xf]
    %v538 = vld [vmem:[%s5 + $0x38] sm:$0xf]
    %v539 = vld [vmem:[%s5 + $0x3c] sm:$0xf]
    %v540 = vld [vmem:[%s6] sm:$0x1]
    %v542 = vlaneseq
    %v543 = vshrl.u32 %v542, 7
    %v544 = vsub.s32 0, %v543
    %v545 = vrot.slane %v540, %v544
    %v563 = vunpack.c.l.b16 %v524
    %v564 = vunpack.c.l.b16 %v525
    %v565 = vunpack.c.l.b16 %v526
    %v566 = vunpack.c.l.b16 %v527
    %v567 = vunpack.c.l.b16 %v528
    %v568 = vunpack.c.l.b16 %v529
    %v569 = vunpack.c.l.b16 %v530
    %v570 = vunpack.c.l.b16 %v531
    %v571 = vunpack.c.l.b16 %v532
    %v572 = vunpack.c.l.b16 %v533
    %v573 = vunpack.c.l.b16 %v534
    %v574 = vunpack.c.l.b16 %v535
    %v575 = vunpack.c.l.b16 %v536
    %v576 = vunpack.c.l.b16 %v537
    %v577 = vunpack.c.l.b16 %v538
    %v578 = vunpack.c.l.b16 %v539
    %v579 = vpack.c.b16 %v564, %v563
    %v580 = vpack.c.b16 %v566, %v565
    %v581 = vpack.c.b16 %v568, %v567
    %v582 = vpack.c.b16 %v570, %v569
    %v583 = vpack.c.b16 %v572, %v571
    %v584 = vpack.c.b16 %v574, %v573
    %v585 = vpack.c.b16 %v576, %v575
    %v586 = vpack.c.b16 %v578, %v577
    %595 = vmatprep.subr.bf16.mxu0 0
    %596 = vmatpush1.bf16.msra.mxu0 %v579
    %597 = vmatprep.subr.bf16.mxu0 0
    %598 = vmatpush1.bf16.msra.mxu0 %v580
    %599 = vmatprep.subr.bf16.mxu0 0
    %600 = vmatpush1.bf16.msra.mxu0 %v581
    %601 = vmatprep.subr.bf16.mxu0 0
    %602 = vmatpush1.bf16.msra.mxu0 %v582
    %603 = vmatprep.subr.bf16.mxu0 0
    %604 = vmatpush1.bf16.msra.mxu0 %v583
    %605 = vmatprep.subr.bf16.mxu0 0
    %606 = vmatpush1.bf16.msra.mxu0 %v584
    %607 = vmatprep.subr.bf16.mxu0 0
    %608 = vmatpush1.bf16.msra.mxu0 %v585
    %609 = vmatprep.subr.bf16.mxu0 0
    %610 = vmatpush1.bf16.msra.mxu0 %v586
    %611 = vmatprep.subr.bf16.mxu0 0
    %612 = vmatpush1.bf16.msra.mxu0 0
    %613 = vmatprep.subr.bf16.mxu0 0
    %614 = vmatpush1.bf16.msra.mxu0 0
    %615 = vmatprep.subr.bf16.mxu0 0
    %616 = vmatpush1.bf16.msra.mxu0 0
    %617 = vmatprep.subr.bf16.mxu0 0
    %618 = vmatpush1.bf16.msra.mxu0 0
    %619 = vmatprep.subr.bf16.mxu0 0
    %620 = vmatpush1.bf16.msra.mxu0 0
    %621 = vmatprep.subr.bf16.mxu0 0
    %622 = vmatpush1.bf16.msra.mxu0 0
    %623 = vmatprep.subr.bf16.mxu0 0
    %624 = vmatpush1.bf16.msra.mxu0 0
    %625 = vmatprep.subr.bf16.mxu0 0
    %626 = vmatpush1.bf16.msra.mxu0 0
    %627 = vmatprep.mubr.bf16.mxu0 0
    %628 = vmatmul.mubr.bf16.gmra.mrb[0].mxu0 %v523
    %v629 = vpop.f32.mrb[0].mxu0
    %v630 = vadd.f32 %v545, %v629
    %v631 = vpop.f32.mrb[0].mxu0
    %v632 = vpop.f32.mrb[0].mxu0
    %v633 = vadd.f32 %v545, %v632
    %v634 = vpop.f32.mrb[0].mxu0
    %635 = vdwg.mxu0
    %v636 = vmax.f32 %v630, 0.0
    %v637 = vmax.f32 %v633, 0.0
    %v638 = vpack.c.bf16 %v637, %v636
    %v639 = vld [vmem:[#allocation9] sm:$0xf]
    %v640 = vld [vmem:[#allocation9 + $0x4] sm:$0xf]
    %v641 = vld [vmem:[#allocation9 + $0x8] sm:$0xf]
    %v642 = vld [vmem:[#allocation9 + $0xc] sm:$0xf]
    %v643 = vld [vmem:[#allocation9 + $0x10] sm:$0xf]
    %v644 = vld [vmem:[#allocation9 + $0x14] sm:$0xf]
    %v645 = vld [vmem:[#allocation9 + $0x18] sm:$0xf]
    %v646 = vld [vmem:[#allocation9 + $0x1c] sm:$0xf]
    %v647 = vld [vmem:[#allocation9 + $0x20] sm:$0xf]
    %v648 = vld [vmem:[#allocation9 + $0x24] sm:$0xf]
    %v649 = vld [vmem:[#allocation9 + $0x28] sm:$0xf]
    %v650 = vld [vmem:[#allocation9 + $0x2c] sm:$0xf]
    %v651 = vld [vmem:[#allocation9 + $0x30] sm:$0xf]
    %v652 = vld [vmem:[#allocation9 + $0x34] sm:$0xf]
    %v653 = vld [vmem:[#allocation9 + $0x38] sm:$0xf]
    %v654 = vld [vmem:[#allocation9 + $0x3c] sm:$0xf]
    %v655 = vld [vmem:[#allocation10] sm:$0x1]
    %v657 = vlaneseq
    %v658 = vshrl.u32 %v657, 7
    %v659 = vsub.s32 0, %v658
    %v660 = vrot.slane %v655, %v659
    %v678 = vunpack.c.l.b16 %v639
    %v679 = vunpack.c.l.b16 %v640
    %v680 = vunpack.c.l.b16 %v641
    %v681 = vunpack.c.l.b16 %v642
    %v682 = vunpack.c.l.b16 %v643
    %v683 = vunpack.c.l.b16 %v644
    %v684 = vunpack.c.l.b16 %v645
    %v685 = vunpack.c.l.b16 %v646
    %v686 = vunpack.c.l.b16 %v647
    %v687 = vunpack.c.l.b16 %v648
    %v688 = vunpack.c.l.b16 %v649
    %v689 = vunpack.c.l.b16 %v650
    %v690 = vunpack.c.l.b16 %v651
    %v691 = vunpack.c.l.b16 %v652
    %v692 = vunpack.c.l.b16 %v653
    %v693 = vunpack.c.l.b16 %v654
    %v694 = vpack.c.b16 %v679, %v678
    %v695 = vpack.c.b16 %v681, %v680
    %v696 = vpack.c.b16 %v683, %v682
    %v697 = vpack.c.b16 %v685, %v684
    %v698 = vpack.c.b16 %v687, %v686
    %v699 = vpack.c.b16 %v689, %v688
    %v700 = vpack.c.b16 %v691, %v690
    %v701 = vpack.c.b16 %v693, %v692
    %710 = vmatprep.subr.bf16.mxu0 0
    %711 = vmatpush1.bf16.msra.mxu0 %v694
    %712 = vmatprep.subr.bf16.mxu0 0
    %713 = vmatpush1.bf16.msra.mxu0 %v695
    %714 = vmatprep.subr.bf16.mxu0 0
    %715 = vmatpush1.bf16.msra.mxu0 %v696
    %716 = vmatprep.subr.bf16.mxu0 0
    %717 = vmatpush1.bf16.msra.mxu0 %v697
    %718 = vmatprep.subr.bf16.mxu0 0
    %719 = vmatpush1.bf16.msra.mxu0 %v698
    %720 = vmatprep.subr.bf16.mxu0 0
    %721 = vmatpush1.bf16.msra.mxu0 %v699
    %722 = vmatprep.subr.bf16.mxu0 0
    %723 = vmatpush1.bf16.msra.mxu0 %v700
    %724 = vmatprep.subr.bf16.mxu0 0
    %725 = vmatpush1.bf16.msra.mxu0 %v701
    %726 = vmatprep.subr.bf16.mxu0 0
    %727 = vmatpush1.bf16.msra.mxu0 0
    %728 = vmatprep.subr.bf16.mxu0 0
    %729 = vmatpush1.bf16.msra.mxu0 0
    %730 = vmatprep.subr.bf16.mxu0 0
    %731 = vmatpush1.bf16.msra.mxu0 0
    %732 = vmatprep.subr.bf16.mxu0 0
    %733 = vmatpush1.bf16.msra.mxu0 0
    %734 = vmatprep.subr.bf16.mxu0 0
    %735 = vmatpush1.bf16.msra.mxu0 0
    %736 = vmatprep.subr.bf16.mxu0 0
    %737 = vmatpush1.bf16.msra.mxu0 0
    %738 = vmatprep.subr.bf16.mxu0 0
    %739 = vmatpush1.bf16.msra.mxu0 0
    %740 = vmatprep.subr.bf16.mxu0 0
    %741 = vmatpush1.bf16.msra.mxu0 0
    %742 = vmatprep.mubr.bf16.mxu0 0
    %743 = vmatmul.mubr.bf16.gmra.mrb[0].mxu0 %v638
    %v744 = vpop.f32.mrb[0].mxu0
    %v745 = vadd.f32 %v660, %v744
    %v746 = vpop.f32.mrb[0].mxu0
    %v747 = vpop.f32.mrb[0].mxu0
    %v748 = vadd.f32 %v660, %v747
    %v749 = vpop.f32.mrb[0].mxu0
    %750 = vdwg.mxu0
    %v751 = vmax.f32 %v745, 0.0
    %v752 = vmax.f32 %v748, 0.0
    %v753 = vpack.c.bf16 %v752, %v751
    %v754 = vld [vmem:[#allocation12] sm:$0xf]
    %v755 = vld [vmem:[#allocation12 + $0x4] sm:$0xf]
    %v756 = vld [vmem:[#allocation12 + $0x8] sm:$0xf]
    %v757 = vld [vmem:[#allocation12 + $0xc] sm:$0xf]
    %v758 = vld [vmem:[#allocation12 + $0x10] sm:$0xf]
    %v759 = vld [vmem:[#allocation12 + $0x14] sm:$0xf]
    %v760 = vld [vmem:[#allocation12 + $0x18] sm:$0xf]
    %v761 = vld [vmem:[#allocation12 + $0x1c] sm:$0xf]
    %v762 = vld [vmem:[#allocation12 + $0x20] sm:$0xf]
    %v763 = vld [vmem:[#allocation12 + $0x24] sm:$0xf]
    %v764 = vld [vmem:[#allocation12 + $0x28] sm:$0xf]
    %v765 = vld [vmem:[#allocation12 + $0x2c] sm:$0xf]
    %v766 = vld [vmem:[#allocation12 + $0x30] sm:$0xf]
    %v767 = vld [vmem:[#allocation12 + $0x34] sm:$0xf]
    %v768 = vld [vmem:[#allocation12 + $0x38] sm:$0xf]
    %v769 = vld [vmem:[#allocation12 + $0x3c] sm:$0xf]
    %v770 = vld [vmem:[#allocation13] sm:$0x1]
    %v772 = vlaneseq
    %v773 = vshrl.u32 %v772, 7
    %v774 = vsub.s32 0, %v773
    %v775 = vrot.slane %v770, %v774
    %v793 = vunpack.c.l.b16 %v754
    %v794 = vunpack.c.l.b16 %v755
    %v795 = vunpack.c.l.b16 %v756
    %v796 = vunpack.c.l.b16 %v757
    %v797 = vunpack.c.l.b16 %v758
    %v798 = vunpack.c.l.b16 %v759
    %v799 = vunpack.c.l.b16 %v760
    %v800 = vunpack.c.l.b16 %v761
    %v801 = vunpack.c.l.b16 %v762
    %v802 = vunpack.c.l.b16 %v763
    %v803 = vunpack.c.l.b16 %v764
    %v804 = vunpack.c.l.b16 %v765
    %v805 = vunpack.c.l.b16 %v766
    %v806 = vunpack.c.l.b16 %v767
    %v807 = vunpack.c.l.b16 %v768
    %v808 = vunpack.c.l.b16 %v769
    %v809 = vpack.c.b16 %v794, %v793
    %v810 = vpack.c.b16 %v796, %v795
    %v811 = vpack.c.b16 %v798, %v797
    %v812 = vpack.c.b16 %v800, %v799
    %v813 = vpack.c.b16 %v802, %v801
    %v814 = vpack.c.b16 %v804, %v803
    %v815 = vpack.c.b16 %v806, %v805
    %v816 = vpack.c.b16 %v808, %v807
    %825 = vmatprep.subr.bf16.mxu0 0
    %826 = vmatpush1.bf16.msra.mxu0 %v809
    %827 = vmatprep.subr.bf16.mxu0 0
    %828 = vmatpush1.bf16.msra.mxu0 %v810
    %829 = vmatprep.subr.bf16.mxu0 0
    %830 = vmatpush1.bf16.msra.mxu0 %v811
    %831 = vmatprep.subr.bf16.mxu0 0
    %832 = vmatpush1.bf16.msra.mxu0 %v812
    %833 = vmatprep.subr.bf16.mxu0 0
    %834 = vmatpush1.bf16.msra.mxu0 %v813
    %835 = vmatprep.subr.bf16.mxu0 0
    %836 = vmatpush1.bf16.msra.mxu0 %v814
    %837 = vmatprep.subr.bf16.mxu0 0
    %838 = vmatpush1.bf16.msra.mxu0 %v815
    %839 = vmatprep.subr.bf16.mxu0 0
    %840 = vmatpush1.bf16.msra.mxu0 %v816
    %841 = vmatprep.subr.bf16.mxu0 0
    %842 = vmatpush1.bf16.msra.mxu0 0
    %843 = vmatprep.subr.bf16.mxu0 0
    %844 = vmatpush1.bf16.msra.mxu0 0
    %845 = vmatprep.subr.bf16.mxu0 0
    %846 = vmatpush1.bf16.msra.mxu0 0
    %847 = vmatprep.subr.bf16.mxu0 0
    %848 = vmatpush1.bf16.msra.mxu0 0
    %849 = vmatprep.subr.bf16.mxu0 0
    %850 = vmatpush1.bf16.msra.mxu0 0
    %851 = vmatprep.subr.bf16.mxu0 0
    %852 = vmatpush1.bf16.msra.mxu0 0
    %853 = vmatprep.subr.bf16.mxu0 0
    %854 = vmatpush1.bf16.msra.mxu0 0
    %855 = vmatprep.subr.bf16.mxu0 0
    %856 = vmatpush1.bf16.msra.mxu0 0
    %857 = vmatprep.mubr.bf16.mxu0 0
    %858 = vmatmul.mubr.bf16.gmra.mrb[0].mxu0 %v753
    %v859 = vpop.f32.mrb[0].mxu0
    %v860 = vadd.f32 %v775, %v859
    %v861 = vpop.f32.mrb[0].mxu0
    %v862 = vpop.f32.mrb[0].mxu0
    %v863 = vadd.f32 %v775, %v862
    %v864 = vpop.f32.mrb[0].mxu0
    %865 = vdwg.mxu0
    %v866 = vmax.f32 %v860, 0.0
    %v867 = vmax.f32 %v863, 0.0
    %v868 = vpack.c.bf16 %v867, %v866
    %v869 = vld [vmem:[#allocation15] sm:$0xf]
    %v870 = vld [vmem:[#allocation15 + $0x4] sm:$0xf]
    %v871 = vld [vmem:[#allocation15 + $0x8] sm:$0xf]
    %v872 = vld [vmem:[#allocation15 + $0xc] sm:$0xf]
    %v873 = vld [vmem:[#allocation15 + $0x10] sm:$0xf]
    %v874 = vld [vmem:[#allocation15 + $0x14] sm:$0xf]
    %v875 = vld [vmem:[#allocation15 + $0x18] sm:$0xf]
    %v876 = vld [vmem:[#allocation15 + $0x1c] sm:$0xf]
    %v877 = vld [vmem:[#allocation15 + $0x20] sm:$0xf]
    %v878 = vld [vmem:[#allocation15 + $0x24] sm:$0xf]
    %v879 = vld [vmem:[#allocation15 + $0x28] sm:$0xf]
    %v880 = vld [vmem:[#allocation15 + $0x2c] sm:$0xf]
    %v881 = vld [vmem:[#allocation15 + $0x30] sm:$0xf]
    %v882 = vld [vmem:[#allocation15 + $0x34] sm:$0xf]
    %v883 = vld [vmem:[#allocation15 + $0x38] sm:$0xf]
    %v884 = vld [vmem:[#allocation15 + $0x3c] sm:$0xf]
    %v885 = vld [vmem:[%s12] sm:$0x1]
    %v887 = vlaneseq
    %v888 = vshrl.u32 %v887, 7
    %v889 = vsub.s32 0, %v888
    %v890 = vrot.slane %v885, %v889
    %v908 = vunpack.c.l.b16 %v869
    %v909 = vunpack.c.l.b16 %v870
    %v910 = vunpack.c.l.b16 %v871
    %v911 = vunpack.c.l.b16 %v872
    %v912 = vunpack.c.l.b16 %v873
    %v913 = vunpack.c.l.b16 %v874
    %v914 = vunpack.c.l.b16 %v875
    %v915 = vunpack.c.l.b16 %v876
    %v916 = vunpack.c.l.b16 %v877
    %v917 = vunpack.c.l.b16 %v878
    %v918 = vunpack.c.l.b16 %v879
    %v919 = vunpack.c.l.b16 %v880
    %v920 = vunpack.c.l.b16 %v881
    %v921 = vunpack.c.l.b16 %v882
    %v922 = vunpack.c.l.b16 %v883
    %v923 = vunpack.c.l.b16 %v884
    %v924 = vpack.c.b16 %v909, %v908
    %v925 = vpack.c.b16 %v911, %v910
    %v926 = vpack.c.b16 %v913, %v912
    %v927 = vpack.c.b16 %v915, %v914
    %v928 = vpack.c.b16 %v917, %v916
    %v929 = vpack.c.b16 %v919, %v918
    %v930 = vpack.c.b16 %v921, %v920
    %v931 = vpack.c.b16 %v923, %v922
    %940 = vmatprep.subr.bf16.mxu0 0
    %941 = vmatpush1.bf16.msra.mxu0 %v924
    %942 = vmatprep.subr.bf16.mxu0 0
    %943 = vmatpush1.bf16.msra.mxu0 %v925
    %944 = vmatprep.subr.bf16.mxu0 0
    %945 = vmatpush1.bf16.msra.mxu0 %v926
    %946 = vmatprep.subr.bf16.mxu0 0
    %947 = vmatpush1.bf16.msra.mxu0 %v927
    %948 = vmatprep.subr.bf16.mxu0 0
    %949 = vmatpush1.bf16.msra.mxu0 %v928
    %950 = vmatprep.subr.bf16.mxu0 0
    %951 = vmatpush1.bf16.msra.mxu0 %v929
    %952 = vmatprep.subr.bf16.mxu0 0
    %953 = vmatpush1.bf16.msra.mxu0 %v930
    %954 = vmatprep.subr.bf16.mxu0 0
    %955 = vmatpush1.bf16.msra.mxu0 %v931
    %956 = vmatprep.subr.bf16.mxu0 0
    %957 = vmatpush1.bf16.msra.mxu0 0
    %958 = vmatprep.subr.bf16.mxu0 0
    %959 = vmatpush1.bf16.msra.mxu0 0
    %960 = vmatprep.subr.bf16.mxu0 0
    %961 = vmatpush1.bf16.msra.mxu0 0
    %962 = vmatprep.subr.bf16.mxu0 0
    %963 = vmatpush1.bf16.msra.mxu0 0
    %964 = vmatprep.subr.bf16.mxu0 0
    %965 = vmatpush1.bf16.msra.mxu0 0
    %966 = vmatprep.subr.bf16.mxu0 0
    %967 = vmatpush1.bf16.msra.mxu0 0
    %968 = vmatprep.subr.bf16.mxu0 0
    %969 = vmatpush1.bf16.msra.mxu0 0
    %970 = vmatprep.subr.bf16.mxu0 0
    %971 = vmatpush1.bf16.msra.mxu0 0
    %972 = vmatprep.mubr.bf16.mxu0 0
    %973 = vmatmul.mubr.bf16.gmra.mrb[0].mxu0 %v868
    %v974 = vpop.f32.mrb[0].mxu0
    %v975 = vadd.f32 %v890, %v974
    %v976 = vpop.f32.mrb[0].mxu0
    %v977 = vpop.f32.mrb[0].mxu0
    %v978 = vadd.f32 %v890, %v977
    %v979 = vpop.f32.mrb[0].mxu0
    %980 = vdwg.mxu0
    %v981 = vmax.f32 %v975, 0.0
    %v982 = vmax.f32 %v978, 0.0
    %v983 = vpack.c.bf16 %v982, %v981
    %v984 = vld [vmem:[#allocation16] sm:$0xf]
    %v985 = vld [vmem:[#allocation16 + $0x4] sm:$0xf]
    %v986 = vld [vmem:[#allocation16 + $0x8] sm:$0xf]
    %v987 = vld [vmem:[#allocation16 + $0xc] sm:$0xf]
    %v988 = vld [vmem:[#allocation16 + $0x10] sm:$0xf]
    %v989 = vld [vmem:[#allocation16 + $0x14] sm:$0xf]
    %v990 = vld [vmem:[#allocation16 + $0x18] sm:$0xf]
    %v991 = vld [vmem:[#allocation16 + $0x1c] sm:$0xf]
    %v992 = vld [vmem:[#allocation16 + $0x20] sm:$0xf]
    %v993 = vld [vmem:[#allocation16 + $0x24] sm:$0xf]
    %v994 = vld [vmem:[#allocation16 + $0x28] sm:$0xf]
    %v995 = vld [vmem:[#allocation16 + $0x2c] sm:$0xf]
    %v996 = vld [vmem:[#allocation16 + $0x30] sm:$0xf]
    %v997 = vld [vmem:[#allocation16 + $0x34] sm:$0xf]
    %v998 = vld [vmem:[#allocation16 + $0x38] sm:$0xf]
    %v999 = vld [vmem:[#allocation16 + $0x3c] sm:$0xf]
    %v1000 = vld [vmem:[%s14] sm:$0x1]
    %v1002 = vlaneseq
    %v1003 = vshrl.u32 %v1002, 7
    %v1004 = vsub.s32 0, %v1003
    %v1005 = vrot.slane %v1000, %v1004
    %v1023 = vunpack.c.l.b16 %v984
    %v1024 = vunpack.c.l.b16 %v985
    %v1025 = vunpack.c.l.b16 %v986
    %v1026 = vunpack.c.l.b16 %v987
    %v1027 = vunpack.c.l.b16 %v988
    %v1028 = vunpack.c.l.b16 %v989
    %v1029 = vunpack.c.l.b16 %v990
    %v1030 = vunpack.c.l.b16 %v991
    %v1031 = vunpack.c.l.b16 %v992
    %v1032 = vunpack.c.l.b16 %v993
    %v1033 = vunpack.c.l.b16 %v994
    %v1034 = vunpack.c.l.b16 %v995
    %v1035 = vunpack.c.l.b16 %v996
    %v1036 = vunpack.c.l.b16 %v997
    %v1037 = vunpack.c.l.b16 %v998
    %v1038 = vunpack.c.l.b16 %v999
    %v1039 = vpack.c.b16 %v1024, %v1023
    %v1040 = vpack.c.b16 %v1026, %v1025
    %v1041 = vpack.c.b16 %v1028, %v1027
    %v1042 = vpack.c.b16 %v1030, %v1029
    %v1043 = vpack.c.b16 %v1032, %v1031
    %v1044 = vpack.c.b16 %v1034, %v1033
    %v1045 = vpack.c.b16 %v1036, %v1035
    %v1046 = vpack.c.b16 %v1038, %v1037
    %1055 = vmatprep.subr.bf16.mxu0 0
    %1056 = vmatpush1.bf16.msra.mxu0 %v1039
    %1057 = vmatprep.subr.bf16.mxu0 0
    %1058 = vmatpush1.bf16.msra.mxu0 %v1040
    %1059 = vmatprep.subr.bf16.mxu0 0
    %1060 = vmatpush1.bf16.msra.mxu0 %v1041
    %1061 = vmatprep.subr.bf16.mxu0 0
    %1062 = vmatpush1.bf16.msra.mxu0 %v1042
    %1063 = vmatprep.subr.bf16.mxu0 0
    %1064 = vmatpush1.bf16.msra.mxu0 %v1043
    %1065 = vmatprep.subr.bf16.mxu0 0
    %1066 = vmatpush1.bf16.msra.mxu0 %v1044
    %1067 = vmatprep.subr.bf16.mxu0 0
    %1068 = vmatpush1.bf16.msra.mxu0 %v1045
    %1069 = vmatprep.subr.bf16.mxu0 0
    %1070 = vmatpush1.bf16.msra.mxu0 %v1046
    %1071 = vmatprep.subr.bf16.mxu0 0
    %1072 = vmatpush1.bf16.msra.mxu0 0
    %1073 = vmatprep.subr.bf16.mxu0 0
    %1074 = vmatpush1.bf16.msra.mxu0 0
    %1075 = vmatprep.subr.bf16.mxu0 0
    %1076 = vmatpush1.bf16.msra.mxu0 0
    %1077 = vmatprep.subr.bf16.mxu0 0
    %1078 = vmatpush1.bf16.msra.mxu0 0
    %1079 = vmatprep.subr.bf16.mxu0 0
    %1080 = vmatpush1.bf16.msra.mxu0 0
    %1081 = vmatprep.subr.bf16.mxu0 0
    %1082 = vmatpush1.bf16.msra.mxu0 0
    %1083 = vmatprep.subr.bf16.mxu0 0
    %1084 = vmatpush1.bf16.msra.mxu0 0
    %1085 = vmatprep.subr.bf16.mxu0 0
    %1086 = vmatpush1.bf16.msra.mxu0 0
    %1087 = vmatprep.mubr.bf16.mxu0 0
    %1088 = vmatmul.mubr.bf16.gmra.mrb[0].mxu0 %v983
    %v1089 = vpop.f32.mrb[0].mxu0
    %v1090 = vadd.f32 %v1005, %v1089
    %v1091 = vpop.f32.mrb[0].mxu0
    %v1092 = vpop.f32.mrb[0].mxu0
    %v1093 = vadd.f32 %v1005, %v1092
    %v1094 = vpop.f32.mrb[0].mxu0
    %1095 = vdwg.mxu0
    %v1096 = vmax.f32 %v1090, 0.0
    %v1097 = vmax.f32 %v1093, 0.0
    %v1098 = vpack.c.bf16 %v1097, %v1096
    %v1099 = vld [vmem:[#allocation18] sm:$0xf]
    %v1100 = vld [vmem:[#allocation18 + $0x4] sm:$0xf]
    %v1101 = vld [vmem:[#allocation18 + $0x8] sm:$0xf]
    %v1102 = vld [vmem:[#allocation18 + $0xc] sm:$0xf]
    %v1103 = vld [vmem:[#allocation18 + $0x10] sm:$0xf]
    %v1104 = vld [vmem:[#allocation18 + $0x14] sm:$0xf]
    %v1105 = vld [vmem:[#allocation18 + $0x18] sm:$0xf]
    %v1106 = vld [vmem:[#allocation18 + $0x1c] sm:$0xf]
    %v1107 = vld [vmem:[#allocation18 + $0x20] sm:$0xf]
    %v1108 = vld [vmem:[#allocation18 + $0x24] sm:$0xf]
    %v1109 = vld [vmem:[#allocation18 + $0x28] sm:$0xf]
    %v1110 = vld [vmem:[#allocation18 + $0x2c] sm:$0xf]
    %v1111 = vld [vmem:[#allocation18 + $0x30] sm:$0xf]
    %v1112 = vld [vmem:[#allocation18 + $0x34] sm:$0xf]
    %v1113 = vld [vmem:[#allocation18 + $0x38] sm:$0xf]
    %v1114 = vld [vmem:[#allocation18 + $0x3c] sm:$0xf]
    %v1115 = vld [vmem:[%s16] sm:$0x1]
    %v1117 = vlaneseq
    %v1118 = vshrl.u32 %v1117, 7
    %v1119 = vsub.s32 0, %v1118
    %v1120 = vrot.slane %v1115, %v1119
    %v1138 = vunpack.c.l.b16 %v1099
    %v1139 = vunpack.c.l.b16 %v1100
    %v1140 = vunpack.c.l.b16 %v1101
    %v1141 = vunpack.c.l.b16 %v1102
    %v1142 = vunpack.c.l.b16 %v1103
    %v1143 = vunpack.c.l.b16 %v1104
    %v1144 = vunpack.c.l.b16 %v1105
    %v1145 = vunpack.c.l.b16 %v1106
    %v1146 = vunpack.c.l.b16 %v1107
    %v1147 = vunpack.c.l.b16 %v1108
    %v1148 = vunpack.c.l.b16 %v1109
    %v1149 = vunpack.c.l.b16 %v1110
    %v1150 = vunpack.c.l.b16 %v1111
    %v1151 = vunpack.c.l.b16 %v1112
    %v1152 = vunpack.c.l.b16 %v1113
    %v1153 = vunpack.c.l.b16 %v1114
    %v1154 = vpack.c.b16 %v1139, %v1138
    %v1155 = vpack.c.b16 %v1141, %v1140
    %v1156 = vpack.c.b16 %v1143, %v1142
    %v1157 = vpack.c.b16 %v1145, %v1144
    %v1158 = vpack.c.b16 %v1147, %v1146
    %v1159 = vpack.c.b16 %v1149, %v1148
    %v1160 = vpack.c.b16 %v1151, %v1150
    %v1161 = vpack.c.b16 %v1153, %v1152
    %1170 = vmatprep.subr.bf16.mxu0 0
    %1171 = vmatpush1.bf16.msra.mxu0 %v1154
    %1172 = vmatprep.subr.bf16.mxu0 0
    %1173 = vmatpush1.bf16.msra.mxu0 %v1155
    %1174 = vmatprep.subr.bf16.mxu0 0
    %1175 = vmatpush1.bf16.msra.mxu0 %v1156
    %1176 = vmatprep.subr.bf16.mxu0 0
    %1177 = vmatpush1.bf16.msra.mxu0 %v1157
    %1178 = vmatprep.subr.bf16.mxu0 0
    %1179 = vmatpush1.bf16.msra.mxu0 %v1158
    %1180 = vmatprep.subr.bf16.mxu0 0
    %1181 = vmatpush1.bf16.msra.mxu0 %v1159
    %1182 = vmatprep.subr.bf16.mxu0 0
    %1183 = vmatpush1.bf16.msra.mxu0 %v1160
    %1184 = vmatprep.subr.bf16.mxu0 0
    %1185 = vmatpush1.bf16.msra.mxu0 %v1161
    %1186 = vmatprep.subr.bf16.mxu0 0
    %1187 = vmatpush1.bf16.msra.mxu0 0
    %1188 = vmatprep.subr.bf16.mxu0 0
    %1189 = vmatpush1.bf16.msra.mxu0 0
    %1190 = vmatprep.subr.bf16.mxu0 0
    %1191 = vmatpush1.bf16.msra.mxu0 0
    %1192 = vmatprep.subr.bf16.mxu0 0
    %1193 = vmatpush1.bf16.msra.mxu0 0
    %1194 = vmatprep.subr.bf16.mxu0 0
    %1195 = vmatpush1.bf16.msra.mxu0 0
    %1196 = vmatprep.subr.bf16.mxu0 0
    %1197 = vmatpush1.bf16.msra.mxu0 0
    %1198 = vmatprep.subr.bf16.mxu0 0
    %1199 = vmatpush1.bf16.msra.mxu0 0
    %1200 = vmatprep.subr.bf16.mxu0 0
    %1201 = vmatpush1.bf16.msra.mxu0 0
    %1202 = vmatprep.mubr.bf16.mxu0 0
    %1203 = vmatmul.mubr.bf16.gmra.mrb[0].mxu0 %v1098
    %v1204 = vpop.f32.mrb[0].mxu0
    %v1205 = vadd.f32 %v1120, %v1204
    %v1206 = vpop.f32.mrb[0].mxu0
    %v1207 = vpop.f32.mrb[0].mxu0
    %v1208 = vadd.f32 %v1120, %v1207
    %v1209 = vpop.f32.mrb[0].mxu0
    %1210 = vdwg.mxu0
    %v1211 = vmax.f32 %v1205, 0.0
    %v1212 = vmax.f32 %v1208, 0.0
    %v1213 = vpack.c.bf16 %v1212, %v1211
    %v1214 = vld [vmem:[#allocation19] sm:$0xff]
    %v1215 = vld [vmem:[#allocation19 + $0x8] sm:$0xff]
    %v1216 = vld [vmem:[#allocation19 + $0x10] sm:$0xff]
    %v1217 = vld [vmem:[#allocation19 + $0x18] sm:$0xff]
    %v1218 = vld [vmem:[#allocation19 + $0x20] sm:$0xff]
    %v1219 = vld [vmem:[#allocation19 + $0x28] sm:$0xff]
    %v1220 = vld [vmem:[#allocation19 + $0x30] sm:$0xff]
    %v1221 = vld [vmem:[#allocation19 + $0x38] sm:$0xff]
    %v1222 = vld [vmem:[#allocation19 + $0x40] sm:$0xff]
    %v1223 = vld [vmem:[#allocation19 + $0x48] sm:$0xff]
    %v1224 = vld [vmem:[#allocation19 + $0x50] sm:$0xff]
    %v1225 = vld [vmem:[#allocation19 + $0x58] sm:$0xff]
    %v1226 = vld [vmem:[#allocation19 + $0x60] sm:$0xff]
    %v1227 = vld [vmem:[#allocation19 + $0x68] sm:$0xff]
    %v1228 = vld [vmem:[#allocation19 + $0x70] sm:$0xff]
    %v1229 = vld [vmem:[#allocation19 + $0x78] sm:$0xff]
    %v1230 = vld [vmem:[%s18] sm:$0x3]
    %v1232 = vlaneseq
    %v1233 = vshrl.u32 %v1232, 7
    %v1234 = vsub.s32 0, %v1233
    %v1235 = vrot.slane %v1230, %v1234
    %v1236 = vlaneseq
    %v1237 = vshrl.u32 %v1236, 7
    %v1238 = vsub.s32 1, %v1237
    %v1239 = vrot.slane %v1230, %v1238
    %v1258 = vunpack.c.l.b16 %v1214
    %v1259 = vunpack.c.h.b16 %v1214
    %v1260 = vunpack.c.l.b16 %v1215
    %v1261 = vunpack.c.h.b16 %v1215
    %v1262 = vunpack.c.l.b16 %v1216
    %v1263 = vunpack.c.h.b16 %v1216
    %v1264 = vunpack.c.l.b16 %v1217
    %v1265 = vunpack.c.h.b16 %v1217
    %v1266 = vunpack.c.l.b16 %v1218
    %v1267 = vunpack.c.h.b16 %v1218
    %v1268 = vunpack.c.l.b16 %v1219
    %v1269 = vunpack.c.h.b16 %v1219
    %v1270 = vunpack.c.l.b16 %v1220
    %v1271 = vunpack.c.h.b16 %v1220
    %v1272 = vunpack.c.l.b16 %v1221
    %v1273 = vunpack.c.h.b16 %v1221
    %v1274 = vunpack.c.l.b16 %v1222
    %v1275 = vunpack.c.h.b16 %v1222
    %v1276 = vunpack.c.l.b16 %v1223
    %v1277 = vunpack.c.h.b16 %v1223
    %v1278 = vunpack.c.l.b16 %v1224
    %v1279 = vunpack.c.h.b16 %v1224
    %v1280 = vunpack.c.l.b16 %v1225
    %v1281 = vunpack.c.h.b16 %v1225
    %v1282 = vunpack.c.l.b16 %v1226
    %v1283 = vunpack.c.h.b16 %v1226
    %v1284 = vunpack.c.l.b16 %v1227
    %v1285 = vunpack.c.h.b16 %v1227
    %v1286 = vunpack.c.l.b16 %v1228
    %v1287 = vunpack.c.h.b16 %v1228
    %v1288 = vunpack.c.l.b16 %v1229
    %v1289 = vunpack.c.h.b16 %v1229
    %v1290 = vpack.c.b16 %v1260, %v1258
    %v1291 = vpack.c.b16 %v1261, %v1259
    %v1292 = vpack.c.b16 %v1264, %v1262
    %v1293 = vpack.c.b16 %v1265, %v1263
    %v1294 = vpack.c.b16 %v1268, %v1266
    %v1295 = vpack.c.b16 %v1269, %v1267
    %v1296 = vpack.c.b16 %v1272, %v1270
    %v1297 = vpack.c.b16 %v1273, %v1271
    %v1298 = vpack.c.b16 %v1276, %v1274
    %v1299 = vpack.c.b16 %v1277, %v1275
    %v1300 = vpack.c.b16 %v1280, %v1278
    %v1301 = vpack.c.b16 %v1281, %v1279
    %v1302 = vpack.c.b16 %v1284, %v1282
    %v1303 = vpack.c.b16 %v1285, %v1283
    %v1304 = vpack.c.b16 %v1288, %v1286
    %v1305 = vpack.c.b16 %v1289, %v1287
    %1322 = vmatprep.subr.bf16.mxu0 %v1291
    %1323 = vmatpush1.bf16.msra.mxu0 %v1290
    %1324 = vmatprep.subr.bf16.mxu0 %v1293
    %1325 = vmatpush1.bf16.msra.mxu0 %v1292
    %1326 = vmatprep.subr.bf16.mxu0 %v1295
    %1327 = vmatpush1.bf16.msra.mxu0 %v1294
    %1328 = vmatprep.subr.bf16.mxu0 %v1297
    %1329 = vmatpush1.bf16.msra.mxu0 %v1296
    %1330 = vmatprep.subr.bf16.mxu0 %v1299
    %1331 = vmatpush1.bf16.msra.mxu0 %v1298
    %1332 = vmatprep.subr.bf16.mxu0 %v1301
    %1333 = vmatpush1.bf16.msra.mxu0 %v1300
    %1334 = vmatprep.subr.bf16.mxu0 %v1303
    %1335 = vmatpush1.bf16.msra.mxu0 %v1302
    %1336 = vmatprep.subr.bf16.mxu0 %v1305
    %1337 = vmatpush1.bf16.msra.mxu0 %v1304
    %1338 = vmatprep.subr.bf16.mxu0 0
    %1339 = vmatpush1.bf16.msra.mxu0 0
    %1340 = vmatprep.subr.bf16.mxu0 0
    %1341 = vmatpush1.bf16.msra.mxu0 0
    %1342 = vmatprep.subr.bf16.mxu0 0
    %1343 = vmatpush1.bf16.msra.mxu0 0
    %1344 = vmatprep.subr.bf16.mxu0 0
    %1345 = vmatpush1.bf16.msra.mxu0 0
    %1346 = vmatprep.subr.bf16.mxu0 0
    %1347 = vmatpush1.bf16.msra.mxu0 0
    %1348 = vmatprep.subr.bf16.mxu0 0
    %1349 = vmatpush1.bf16.msra.mxu0 0
    %1350 = vmatprep.subr.bf16.mxu0 0
    %1351 = vmatpush1.bf16.msra.mxu0 0
    %1352 = vmatprep.subr.bf16.mxu0 0
    %1353 = vmatpush1.bf16.msra.mxu0 0
    %1354 = vmatprep.mubr.bf16.mxu0 0
    %1355 = vmatmul.mubr.bf16.gmra.mrb[0].mxu0 %v1213
    %v1356 = vpop.f32.mrb[0].mxu0
    %v1357 = vadd.f32 %v1235, %v1356
    %v1358 = vpop.f32.mrb[0].mxu0
    %v1359 = vadd.f32 %v1239, %v1358
    %v1360 = vpop.f32.mrb[0].mxu0
    %v1361 = vadd.f32 %v1235, %v1360
    %v1362 = vpop.f32.mrb[0].mxu0
    %v1363 = vadd.f32 %v1239, %v1362
    %1364 = vdwg.mxu0
    %1365 = vst [vmem:[%s19] sm:$0xff] %v1357
    %1366 = vst [vmem:[%s19 + $0x8] sm:$0xff] %v1359
    %1367 = vst [vmem:[%s19 + $0x10] sm:$0xff] %v1361
    %1368 = vst [vmem:[%s19 + $0x18] sm:$0xff] %v1363
    // Predicated region
    $region126: #{_lambda_.1} parent=1 // pred_check
      _
    $region127: #{_lambda_.1} parent=1 // pred_check_branch
      %1370 = sbr.rel (0) target = $region129
    $region128: #{_lambda_.1} parent=1 // pred_region
      _
    $region129: #{_lambda_.1} parent=1 // pred_fallthru
      _
    // Predicated region
    $region130: #{_lambda_.1} parent=1 // pred_check
      _
    $region131: #{_lambda_.1} parent=1 // pred_check_branch
      %1372 = sbr.rel (0) target = $region133
    $region132: #{_lambda_.1} parent=1 // pred_region
      _
    $region133: #{_lambda_.1} parent=1 // pred_fallthru
      _
    %1373 = vsyncpa [#allocation3], 1
    %1374 = vsyncpa [#allocation5], 1
    %1375 = vsyncpa [#allocation8], 1
    %1376 = vsyncpa [#allocation11], 1
    %1377 = vsyncpa [#allocation14], 1
    %1378 = vsyncpa [#allocation17], 1
    %1379 = vsyncpa [#allocation20], 1

</llo_original>
